<compile_context>
chip_gen: v7x
topology: tpu7x:2x2x1
jax: 0.10.0
libtpu: 0.0.40
codegen_flags: <defaults>
</compile_context>

<pallas_src>
import jax
import jax.numpy as jnp
from jax.experimental import pallas as pl
from jax.experimental.pallas import tpu as pltpu


def policy_kernel(x_ref, w1_ref, b1_ref, w2_ref, b2_ref, w3_ref, b3_ref, out_ref):
    x = x_ref[...]

    # Read biases once (hygiene: avoid re-reading refs if body is ever looped).
    b1 = b1_ref[...]
    b2 = b2_ref[...]
    b3 = b3_ref[...]

    # fc1 + ReLU
    h1 = jnp.dot(x, w1_ref[...], preferred_element_type=jnp.float32) + b1
    h1 = jnp.maximum(h1, 0.0)

    # fc2 + ReLU
    h2 = jnp.dot(h1, w2_ref[...], preferred_element_type=jnp.float32) + b2
    h2 = jnp.maximum(h2, 0.0)

    # action_head (output dim padded to a lane-dense 128 multiple; padded
    # columns carry a -1e30 bias so exp(...) ~= 0 and softmax is unaffected).
    logits = jnp.dot(h2, w3_ref[...], preferred_element_type=jnp.float32) + b3

    # softmax over last dim (numerically stable), reciprocal on the EUP.
    m = jnp.max(logits, axis=-1, keepdims=True)
    e = jnp.exp(logits - m)
    denom = jnp.sum(e, axis=-1, keepdims=True)
    inv = pl.reciprocal(denom, approx=True)
    out_ref[...] = (e * inv).astype(out_ref.dtype)


def policy_network_forward(x, params, *, batch_tile=512):
    """x: (B, input_dim) float32. params: dict of transposed weights + biases."""
    B, input_dim = x.shape
    w1, b1 = params["w1"], params["b1"]          # (in, hid), (1, hid)
    w2, b2 = params["w2"], params["b2"]          # (hid, hid), (1, hid)
    w3, b3 = params["w3"], params["b3"]          # (hid, out), (1, out)
    hidden_dim = w1.shape[1]
    output_dim = w3.shape[1]

    # Lane-dense output: pad output dim up to a multiple of 128.
    out_pad = max(128, ((output_dim + 127) // 128) * 128)
    w3p = jnp.zeros((hidden_dim, out_pad), w3.dtype).at[:, :output_dim].set(w3)
    b3p = jnp.full((1, out_pad), -1e30, b3.dtype).at[:, :output_dim].set(b3)

    # Batch tile: multiple of 8 (f32 sublanes), capped by batch_tile; pad B
    # up to a whole number of tiles (padded rows are sliced off below).
    tile = min(batch_tile, ((B + 7) // 8) * 8)
    tile = ((tile + 7) // 8) * 8
    b_padded = pl.cdiv(B, tile) * tile
    if b_padded != B:
        x = jnp.pad(x, ((0, b_padded - B), (0, 0)))

    grid = (b_padded // tile,)

    out = pl.pallas_call(
        policy_kernel,
        out_shape=jax.ShapeDtypeStruct((b_padded, out_pad), jnp.float32),
        grid_spec=pltpu.PrefetchScalarGridSpec(
            num_scalar_prefetch=0,
            grid=grid,
            in_specs=[
                pl.BlockSpec((tile, input_dim), lambda i: (i, 0)),         # x tile
                pl.BlockSpec((input_dim, hidden_dim), lambda i: (0, 0)),   # w1
                pl.BlockSpec((1, hidden_dim), lambda i: (0, 0)),           # b1
                pl.BlockSpec((hidden_dim, hidden_dim), lambda i: (0, 0)),  # w2
                pl.BlockSpec((1, hidden_dim), lambda i: (0, 0)),           # b2
                pl.BlockSpec((hidden_dim, out_pad), lambda i: (0, 0)),     # w3 (padded)
                pl.BlockSpec((1, out_pad), lambda i: (0, 0)),              # b3 (padded)
            ],
            out_specs=pl.BlockSpec((tile, out_pad), lambda i: (i, 0)),
        ),
        compiler_params=pltpu.CompilerParams(
            dimension_semantics=("parallel",),
        ),
    )(x, w1, b1, w2, b2, w3p, b3p)

    # Slice away batch padding and lane padding.
    return out[:B, :output_dim]


def init_params(key, input_dim, hidden_dim, output_dim):
    """Deterministic init mimicking nn.Linear's U(-1/sqrt(fan_in), 1/sqrt(fan_in))."""
    ks = jax.random.split(key, 6)

    def lin(kw, kb, fan_in, fan_out):
        bound = 1.0 / jnp.sqrt(fan_in)
        w = jax.random.uniform(kw, (fan_in, fan_out), jnp.float32, -bound, bound)
        b = jax.random.uniform(kb, (1, fan_out), jnp.float32, -bound, bound)
        return w, b

    w1, b1 = lin(ks[0], ks[1], input_dim, hidden_dim)
    w2, b2 = lin(ks[2], ks[3], hidden_dim, hidden_dim)
    w3, b3 = lin(ks[4], ks[5], hidden_dim, output_dim)
    return dict(w1=w1, b1=b1, w2=w2, b2=b2, w3=w3, b3=b3)


def reference_forward(x, p):
    h1 = jnp.maximum(x @ p["w1"] + p["b1"], 0.0)
    h2 = jnp.maximum(h1 @ p["w2"] + p["b2"], 0.0)
    logits = h2 @ p["w3"] + p["b3"]
    return jax.nn.softmax(logits, axis=-1)


if __name__ == "__main__":
    key = jax.random.PRNGKey(0)
    k_x, k_p = jax.random.split(key)

    # Small layer widths per the module; batch chosen so the grid has 2
    # parallel steps at batch_tile=512 (engages both TCs on v7x).
    batch, input_dim, hidden_dim, output_dim = 1024, 16, 32, 8
    x = jax.random.normal(k_x, (batch, input_dim), dtype=jnp.float32)
    params = init_params(k_p, input_dim, hidden_dim, output_dim)

    out = policy_network_forward(x, params)
    out = jax.block_until_ready(out)

    ref = reference_forward(x, params)
    assert out.shape == (batch, output_dim)
    # approx=True reciprocal has ~1e-4 relative error -> relax tolerance.
    assert jnp.allclose(out, ref, atol=2e-3, rtol=2e-3)
    # softmax rows sum to ~1
    assert jnp.allclose(jnp.sum(out, axis=-1), 1.0, atol=2e-3)

    # Also exercise a ragged batch (not a multiple of the tile).
    x_r = jax.random.normal(k_x, (37, input_dim), dtype=jnp.float32)
    out_r = jax.block_until_ready(policy_network_forward(x_r, params))
    ref_r = reference_forward(x_r, params)
    assert out_r.shape == (37, output_dim)
    assert jnp.allclose(out_r, ref_r, atol=2e-3, rtol=2e-3)

    print("KERNEL_OK")
</pallas_src>

<mosaic_0001>
module attributes {stable_mosaic.version = 11 : i64} {
  func.func @policy_kernel(%arg0: i32, %arg1: memref<512x16xf32, #tpu.memory_space<vmem>>, %arg2: memref<16x32xf32, #tpu.memory_space<vmem>>, %arg3: memref<1x32xf32, #tpu.memory_space<vmem>>, %arg4: memref<32x32xf32, #tpu.memory_space<vmem>>, %arg5: memref<1x32xf32, #tpu.memory_space<vmem>>, %arg6: memref<32x128xf32, #tpu.memory_space<vmem>>, %arg7: memref<1x128xf32, #tpu.memory_space<vmem>>, %arg8: memref<512x128xf32, #tpu.memory_space<vmem>>) attributes {dimension_semantics = [#tpu.dimension_semantics<parallel>], iteration_bounds = array<i64: 2>, scalar_prefetch = 0 : i64, scratch_operands = 0 : i64, tpu.core_type = #tpu.core_type<tc>, window_params = [{transform_indices = @transform_0, window_bounds = array<i64: 512, 16>}, {pipeline_mode = #tpu.pipeline_mode<synchronous>, transform_indices = @transform_1, window_bounds = array<i64: 16, 32>}, {pipeline_mode = #tpu.pipeline_mode<synchronous>, transform_indices = @transform_2, window_bounds = array<i64: 1, 32>}, {pipeline_mode = #tpu.pipeline_mode<synchronous>, transform_indices = @transform_3, window_bounds = array<i64: 32, 32>}, {pipeline_mode = #tpu.pipeline_mode<synchronous>, transform_indices = @transform_4, window_bounds = array<i64: 1, 32>}, {pipeline_mode = #tpu.pipeline_mode<synchronous>, transform_indices = @transform_5, window_bounds = array<i64: 32, 128>}, {pipeline_mode = #tpu.pipeline_mode<synchronous>, transform_indices = @transform_6, window_bounds = array<i64: 1, 128>}, {transform_indices = @transform_7, window_bounds = array<i64: 512, 128>}]} {
    %c0 = arith.constant 0 : index
    %c0_0 = arith.constant 0 : index
    %0 = vector.load %arg1[%c0, %c0_0] : memref<512x16xf32, #tpu.memory_space<vmem>>, vector<512x16xf32>
    %c0_1 = arith.constant 0 : index
    %c0_2 = arith.constant 0 : index
    %1 = vector.load %arg3[%c0_1, %c0_2] : memref<1x32xf32, #tpu.memory_space<vmem>>, vector<1x32xf32>
    %c0_3 = arith.constant 0 : index
    %c0_4 = arith.constant 0 : index
    %2 = vector.load %arg5[%c0_3, %c0_4] : memref<1x32xf32, #tpu.memory_space<vmem>>, vector<1x32xf32>
    %c0_5 = arith.constant 0 : index
    %c0_6 = arith.constant 0 : index
    %3 = vector.load %arg7[%c0_5, %c0_6] : memref<1x128xf32, #tpu.memory_space<vmem>>, vector<1x128xf32>
    %c0_7 = arith.constant 0 : index
    %c0_8 = arith.constant 0 : index
    %4 = vector.load %arg2[%c0_7, %c0_8] : memref<16x32xf32, #tpu.memory_space<vmem>>, vector<16x32xf32>
    %cst = arith.constant dense<0.000000e+00> : vector<512x32xf32>
    %5 = tpu.matmul %0, %4, %cst {dimension_numbers = #tpu.dot_dimension_numbers<[1], [0], [0], [1], [0, 0, 1, 1], [], []>} : vector<512x16xf32>, vector<16x32xf32>, vector<512x32xf32> -> vector<512x32xf32>
    %6 = vector.broadcast %1 : vector<1x32xf32> to vector<512x32xf32>
    %7 = arith.addf %5, %6 : vector<512x32xf32>
    %cst_9 = arith.constant 0.000000e+00 : f32
    %8 = vector.broadcast %cst_9 : f32 to vector<512x32xf32>
    %9 = arith.maximumf %7, %8 : vector<512x32xf32>
    %c0_10 = arith.constant 0 : index
    %c0_11 = arith.constant 0 : index
    %10 = vector.load %arg4[%c0_10, %c0_11] : memref<32x32xf32, #tpu.memory_space<vmem>>, vector<32x32xf32>
    %cst_12 = arith.constant dense<0.000000e+00> : vector<512x32xf32>
    %11 = tpu.matmul %9, %10, %cst_12 {dimension_numbers = #tpu.dot_dimension_numbers<[1], [0], [0], [1], [0, 0, 1, 1], [], []>} : vector<512x32xf32>, vector<32x32xf32>, vector<512x32xf32> -> vector<512x32xf32>
    %12 = vector.broadcast %2 : vector<1x32xf32> to vector<512x32xf32>
    %13 = arith.addf %11, %12 : vector<512x32xf32>
    %cst_13 = arith.constant 0.000000e+00 : f32
    %14 = vector.broadcast %cst_13 : f32 to vector<512x32xf32>
    %15 = arith.maximumf %13, %14 : vector<512x32xf32>
    %c0_14 = arith.constant 0 : index
    %c0_15 = arith.constant 0 : index
    %16 = vector.load %arg6[%c0_14, %c0_15] : memref<32x128xf32, #tpu.memory_space<vmem>>, vector<32x128xf32>
    %cst_16 = arith.constant dense<0.000000e+00> : vector<512x128xf32>
    %17 = tpu.matmul %15, %16, %cst_16 {dimension_numbers = #tpu.dot_dimension_numbers<[1], [0], [0], [1], [0, 0, 1, 1], [], []>} : vector<512x32xf32>, vector<32x128xf32>, vector<512x128xf32> -> vector<512x128xf32>
    %18 = vector.broadcast %3 : vector<1x128xf32> to vector<512x128xf32>
    %19 = arith.addf %17, %18 : vector<512x128xf32>
    %cst_17 = arith.constant dense<0xFF800000> : vector<512xf32>
    %20 = vector.multi_reduction <maximumf>, %19, %cst_17 [1] : vector<512x128xf32> to vector<512xf32>
    %21 = vector.shape_cast %20 : vector<512xf32> to vector<512x1xf32>
    %22 = vector.broadcast %21 : vector<512x1xf32> to vector<512x128xf32>
    %23 = arith.subf %19, %22 : vector<512x128xf32>
    %24 = math.exp %23 : vector<512x128xf32>
    %cst_18 = arith.constant dense<0.000000e+00> : vector<512xf32>
    %25 = vector.multi_reduction <add>, %24, %cst_18 [1] : vector<512x128xf32> to vector<512xf32>
    %26 = vector.shape_cast %25 : vector<512xf32> to vector<512x1xf32>
    %27 = tpu.reciprocal %26 {approx = true} : vector<512x1xf32> -> vector<512x1xf32>
    %28 = vector.broadcast %27 : vector<512x1xf32> to vector<512x128xf32>
    %29 = arith.mulf %24, %28 : vector<512x128xf32>
    %c0_19 = arith.constant 0 : index
    %c0_20 = arith.constant 0 : index
    %30 = vector.load %arg8[%c0_19, %c0_20] : memref<512x128xf32, #tpu.memory_space<vmem>>, vector<512x128xf32>
    tpu.vector_store %arg8[%c0_19, %c0_20], %29 {strides = array<i32>} : memref<512x128xf32, #tpu.memory_space<vmem>>, vector<512x128xf32>,
    return
  }
  func.func @transform_0(%arg0: i32) -> (i32, i32) {
    %c0_i32 = arith.constant 0 : i32
    %c0_i32_0 = arith.constant 0 : i32
    return %arg0, %c0_i32 : i32, i32
  }
  func.func @transform_1(%arg0: i32) -> (i32, i32) {
    %c0_i32 = arith.constant 0 : i32
    %c0_i32_0 = arith.constant 0 : i32
    %c0_i32_1 = arith.constant 0 : i32
    return %c0_i32, %c0_i32_0 : i32, i32
  }
  func.func @transform_2(%arg0: i32) -> (i32, i32) {
    %c0_i32 = arith.constant 0 : i32
    %c0_i32_0 = arith.constant 0 : i32
    %c0_i32_1 = arith.constant 0 : i32
    return %c0_i32, %c0_i32_0 : i32, i32
  }
  func.func @transform_3(%arg0: i32) -> (i32, i32) {
    %c0_i32 = arith.constant 0 : i32
    %c0_i32_0 = arith.constant 0 : i32
    %c0_i32_1 = arith.constant 0 : i32
    return %c0_i32, %c0_i32_0 : i32, i32
  }
  func.func @transform_4(%arg0: i32) -> (i32, i32) {
    %c0_i32 = arith.constant 0 : i32
    %c0_i32_0 = arith.constant 0 : i32
    %c0_i32_1 = arith.constant 0 : i32
    return %c0_i32, %c0_i32_0 : i32, i32
  }
  func.func @transform_5(%arg0: i32) -> (i32, i32) {
    %c0_i32 = arith.constant 0 : i32
    %c0_i32_0 = arith.constant 0 : i32
    %c0_i32_1 = arith.constant 0 : i32
    return %c0_i32, %c0_i32_0 : i32, i32
  }
  func.func @transform_6(%arg0: i32) -> (i32, i32) {
    %c0_i32 = arith.constant 0 : i32
    %c0_i32_0 = arith.constant 0 : i32
    %c0_i32_1 = arith.constant 0 : i32
    return %c0_i32, %c0_i32_0 : i32, i32
  }
  func.func @transform_7(%arg0: i32) -> (i32, i32) {
    %c0_i32 = arith.constant 0 : i32
    %c0_i32_0 = arith.constant 0 : i32
    return %arg0, %c0_i32 : i32, i32
  }
}

</mosaic_0001>

<llo_original>
// kernel: tpu_custom_call.1
$region0: #{tpu_custom_call.1}
  #allocation0 [shape = 'u32[]', space=smem, size = 0x4, offset = 0x4, fixed_abs, tag = 'smem constant byte address 0x4 - core index']
  #allocation1 [shape = 'u32[144,128]{1,0:T(1,128)}', space=vmem, size = 0x12000, scoped, tag = 'internal scratch']
  %s0 = inlined_call_operand.vmem [shape: f32[1024,16], index: 0, kind: input, shape index: {}]
  %s1 = inlined_call_operand.vmem [shape: f32[16,32], index: 1, kind: input, shape index: {}]
  %s2 = inlined_call_operand.vmem [shape: f32[1,32], index: 2, kind: input, shape index: {}]
  %s3 = inlined_call_operand.vmem [shape: f32[32,32], index: 3, kind: input, shape index: {}]
  %s4 = inlined_call_operand.vmem [shape: f32[1,32], index: 4, kind: input, shape index: {}]
  %s5 = inlined_call_operand.vmem [shape: f32[32,128], index: 5, kind: input, shape index: {}]
  %s6 = inlined_call_operand.vmem [shape: f32[1,128], index: 6, kind: input, shape index: {}]
  %s7 = inlined_call_operand.hbm [shape: f32[1024,128], index: 7, kind: output, shape index: {}]
  %s8 = sld [smem:[#allocation0]]
  $region61: #{tpu_custom_call.1} parent=0
    _
  %s10 = ssub.s32 1, %s8
  %s11 = scalar_select 0, %s10, %s8
  $region1: #{tpu_custom_call.1} parent=0
    #allocation2 [shape = 'u8[524288]{0}', space=vmem, size = 0x80000, scoped, tag = 'output window, operand 0']
    #allocation3 [shape = 's32[2]{0}', space=sflag, size = 0x8, scoped, tag = 'scoped memory for tpu_custom_call.1']
    %12 = vsyncpa [#allocation3], 0
    %s13 = scalar_lea.sflag [#allocation3], 1
    %14 = vsyncpa %s13, 0
    loop: start=0, step=1, limit=4
    $region2: #{tpu_custom_call.1} parent=1 // loop_pre_header
      _
    $region3: #{tpu_custom_call.1} parent=1 // loop_header
      %s16 = sphi 0, %s20
      %p17 = scmp.ge.s32.totalorder %s16, 4
      %s26 = sphi 0, %s28
      %s29 = sphi 0, %s26
      %s30 = sphi 0, %s29
      %s46 = sphi 0, %s30
      %s50 = sphi 0, %s50
      %s52 = sphi 0, %s50
      %s53 = sphi 0, %s52
      %s67 = sphi 0, %s53
      %s71 = sphi 0, %s71
      %s73 = sphi 0, %s71
      %s74 = sphi 0, %s73
      %s88 = sphi 0, %s74
      %s92 = sphi 0, %s92
      %s94 = sphi 0, %s92
      %s95 = sphi 0, %s94
      %s109 = sphi 0, %s95
      %s113 = sphi 0, %s113
      %s115 = sphi 0, %s113
      %s116 = sphi 0, %s115
      %s130 = sphi 0, %s116
      %s134 = sphi 0, %s134
      %s136 = sphi 0, %s134
      %s137 = sphi 0, %s136
      %s151 = sphi 0, %s137
      %s155 = sphi 0, %s155
      %s157 = sphi 0, %s155
      %s158 = sphi 0, %s157
      %s172 = sphi 0, %s158
      %s178 = sphi 0, %s180
      %s181 = sphi 0, %s178
      %s182 = sphi 0, %s181
      %s198 = sphi 0, %s182
    $region4: #{tpu_custom_call.1} parent=1 // loop_header_branch
      %19 = sbr.rel (%p17) target = $region8
    $region5: #{tpu_custom_call.1} parent=1 // loop_body
      %s21 = ssub.s32 %s16, 1
      %s22 = ssub.s32 %s16, 2
      %s23 = sadd.s32 %s16, 1
      %s24 = ssub.s32 %s16, %s23
      %p25 = scmp.eq.s32.totalorder %s24, 0
      %s27 = sadd.s32 %s26, 1
      %s28 = scalar_select %p25, %s26, %s27
      %p31 = pneg %p25
      %p32 = scmp.eq.s32.totalorder %s16, 1
      %p33 = por %p31, %p32
      %p34 = scmp.ne.s32.totalorder %s26, %s29
      %p35 = scmp.eq.s32.totalorder %s16, 0
      %p36 = por %p34, %p35
      %p37 = scmp.ne.s32.totalorder %s26, %s29
      %p38 = scmp.eq.s32.totalorder %s21, 1
      %p39 = por %p37, %p38
      %p40 = scmp.ne.s32.totalorder %s29, %s30
      %p41 = scmp.eq.s32.totalorder %s21, 0
      %p42 = por %p40, %p41
      %p43 = scmp.ne.s32.totalorder %s29, %s30
      %p44 = scmp.eq.s32.totalorder %s22, 1
      %p45 = por %p43, %p44
      %p47 = scmp.ne.s32.totalorder %s30, %s46
      %p48 = scmp.eq.s32.totalorder %s22, 0
      %p49 = por %p47, %p48
      %s51 = sadd.s32 %s50, 1
      %p54 = scmp.eq.s32.totalorder %s16, 1
      %p55 = scmp.ne.s32.totalorder %s50, %s52
      %p56 = scmp.eq.s32.totalorder %s16, 0
      %p57 = por %p55, %p56
      %p58 = scmp.ne.s32.totalorder %s50, %s52
      %p59 = scmp.eq.s32.totalorder %s21, 1
      %p60 = por %p58, %p59
      %p61 = scmp.ne.s32.totalorder %s52, %s53
      %p62 = scmp.eq.s32.totalorder %s21, 0
      %p63 = por %p61, %p62
      %p64 = scmp.ne.s32.totalorder %s52, %s53
      %p65 = scmp.eq.s32.totalorder %s22, 1
      %p66 = por %p64, %p65
      %p68 = scmp.ne.s32.totalorder %s53, %s67
      %p69 = scmp.eq.s32.totalorder %s22, 0
      %p70 = por %p68, %p69
      %s72 = sadd.s32 %s71, 1
      %p75 = scmp.eq.s32.totalorder %s16, 1
      %p76 = scmp.ne.s32.totalorder %s71, %s73
      %p77 = scmp.eq.s32.totalorder %s16, 0
      %p78 = por %p76, %p77
      %p79 = scmp.ne.s32.totalorder %s71, %s73
      %p80 = scmp.eq.s32.totalorder %s21, 1
      %p81 = por %p79, %p80
      %p82 = scmp.ne.s32.totalorder %s73, %s74
      %p83 = scmp.eq.s32.totalorder %s21, 0
      %p84 = por %p82, %p83
      %p85 = scmp.ne.s32.totalorder %s73, %s74
      %p86 = scmp.eq.s32.totalorder %s22, 1
      %p87 = por %p85, %p86
      %p89 = scmp.ne.s32.totalorder %s74, %s88
      %p90 = scmp.eq.s32.totalorder %s22, 0
      %p91 = por %p89, %p90
      %s93 = sadd.s32 %s92, 1
      %p96 = scmp.eq.s32.totalorder %s16, 1
      %p97 = scmp.ne.s32.totalorder %s92, %s94
      %p98 = scmp.eq.s32.totalorder %s16, 0
      %p99 = por %p97, %p98
      %p100 = scmp.ne.s32.totalorder %s92, %s94
      %p101 = scmp.eq.s32.totalorder %s21, 1
      %p102 = por %p100, %p101
      %p103 = scmp.ne.s32.totalorder %s94, %s95
      %p104 = scmp.eq.s32.totalorder %s21, 0
      %p105 = por %p103, %p104
      %p106 = scmp.ne.s32.totalorder %s94, %s95
      %p107 = scmp.eq.s32.totalorder %s22, 1
      %p108 = por %p106, %p107
      %p110 = scmp.ne.s32.totalorder %s95, %s109
      %p111 = scmp.eq.s32.totalorder %s22, 0
      %p112 = por %p110, %p111
      %s114 = sadd.s32 %s113, 1
      %p117 = scmp.eq.s32.totalorder %s16, 1
      %p118 = scmp.ne.s32.totalorder %s113, %s115
      %p119 = scmp.eq.s32.totalorder %s16, 0
      %p120 = por %p118, %p119
      %p121 = scmp.ne.s32.totalorder %s113, %s115
      %p122 = scmp.eq.s32.totalorder %s21, 1
      %p123 = por %p121, %p122
      %p124 = scmp.ne.s32.totalorder %s115, %s116
      %p125 = scmp.eq.s32.totalorder %s21, 0
      %p126 = por %p124, %p125
      %p127 = scmp.ne.s32.totalorder %s115, %s116
      %p128 = scmp.eq.s32.totalorder %s22, 1
      %p129 = por %p127, %p128
      %p131 = scmp.ne.s32.totalorder %s116, %s130
      %p132 = scmp.eq.s32.totalorder %s22, 0
      %p133 = por %p131, %p132
      %s135 = sadd.s32 %s134, 1
      %p138 = scmp.eq.s32.totalorder %s16, 1
      %p139 = scmp.ne.s32.totalorder %s134, %s136
      %p140 = scmp.eq.s32.totalorder %s16, 0
      %p141 = por %p139, %p140
      %p142 = scmp.ne.s32.totalorder %s134, %s136
      %p143 = scmp.eq.s32.totalorder %s21, 1
      %p144 = por %p142, %p143
      %p145 = scmp.ne.s32.totalorder %s136, %s137
      %p146 = scmp.eq.s32.totalorder %s21, 0
      %p147 = por %p145, %p146
      %p148 = scmp.ne.s32.totalorder %s136, %s137
      %p149 = scmp.eq.s32.totalorder %s22, 1
      %p150 = por %p148, %p149
      %p152 = scmp.ne.s32.totalorder %s137, %s151
      %p153 = scmp.eq.s32.totalorder %s22, 0
      %p154 = por %p152, %p153
      %s156 = sadd.s32 %s155, 1
      %p159 = scmp.eq.s32.totalorder %s16, 1
      %p160 = scmp.ne.s32.totalorder %s155, %s157
      %p161 = scmp.eq.s32.totalorder %s16, 0
      %p162 = por %p160, %p161
      %p163 = scmp.ne.s32.totalorder %s155, %s157
      %p164 = scmp.eq.s32.totalorder %s21, 1
      %p165 = por %p163, %p164
      %p166 = scmp.ne.s32.totalorder %s157, %s158
      %p167 = scmp.eq.s32.totalorder %s21, 0
      %p168 = por %p166, %p167
      %p169 = scmp.ne.s32.totalorder %s157, %s158
      %p170 = scmp.eq.s32.totalorder %s22, 1
      %p171 = por %p169, %p170
      %p173 = scmp.ne.s32.totalorder %s158, %s172
      %p174 = scmp.eq.s32.totalorder %s22, 0
      %p175 = por %p173, %p174
      %s176 = ssub.s32 %s16, %s23
      %p177 = scmp.eq.s32.totalorder %s176, 0
      %s179 = sadd.s32 %s178, 1
      %s180 = scalar_select %p177, %s178, %s179
      %p183 = pneg %p177
      %p184 = scmp.eq.s32.totalorder %s16, 1
      %p185 = por %p183, %p184
      %p186 = scmp.ne.s32.totalorder %s178, %s181
      %p187 = scmp.eq.s32.totalorder %s16, 0
      %p188 = por %p186, %p187
      %p189 = scmp.ne.s32.totalorder %s178, %s181
      %p190 = scmp.eq.s32.totalorder %s21, 1
      %p191 = por %p189, %p190
      %p192 = scmp.ne.s32.totalorder %s181, %s182
      %p193 = scmp.eq.s32.totalorder %s21, 0
      %p194 = por %p192, %p193
      %p195 = scmp.ne.s32.totalorder %s181, %s182
      %p196 = scmp.eq.s32.totalorder %s22, 1
      %p197 = por %p195, %p196
      %p199 = scmp.ne.s32.totalorder %s182, %s198
      %p200 = scmp.eq.s32.totalorder %s22, 0
      %p201 = por %p199, %p200
      %p202 = scmp.le.s32.totalorder 1, %s16
      %p203 = scmp.lt.s32.totalorder %s16, 3
      %p204 = pnand %p202, %p203
      %p205 = pneg %p204
      // Predicated region
      $region9: #{tpu_custom_call.1} parent=5 // pred_check
        _
      $region10: #{tpu_custom_call.1} parent=5 // pred_check_branch
        %207 = sbr.rel (%p204) target = $region12
      $region11: #{tpu_custom_call.1} parent=5 // pred_region
        %s208 = ssub.s32 %s16, 1
        // Predicated region
        $region13: #{tpu_custom_call.1} parent=11 // pred_check
          %p209 = pneg %p63
        $region14: #{tpu_custom_call.1} parent=11 // pred_check_branch
          %211 = sbr.rel (%p209) target = $region16
        $region15: #{tpu_custom_call.1} parent=11 // pred_region
          _
        $region16: #{tpu_custom_call.1} parent=11 // pred_fallthru
          _
        // Predicated region
        $region17: #{tpu_custom_call.1} parent=11 // pred_check
          %p212 = pneg %p84
        $region18: #{tpu_custom_call.1} parent=11 // pred_check_branch
          %214 = sbr.rel (%p212) target = $region20
        $region19: #{tpu_custom_call.1} parent=11 // pred_region
          _
        $region20: #{tpu_custom_call.1} parent=11 // pred_fallthru
          _
        // Predicated region
        $region21: #{tpu_custom_call.1} parent=11 // pred_check
          %p215 = pneg %p105
        $region22: #{tpu_custom_call.1} parent=11 // pred_check_branch
          %217 = sbr.rel (%p215) target = $region24
        $region23: #{tpu_custom_call.1} parent=11 // pred_region
          _
        $region24: #{tpu_custom_call.1} parent=11 // pred_fallthru
          _
        // Predicated region
        $region25: #{tpu_custom_call.1} parent=11 // pred_check
          %p218 = pneg %p126
        $region26: #{tpu_custom_call.1} parent=11 // pred_check_branch
          %220 = sbr.rel (%p218) target = $region28
        $region27: #{tpu_custom_call.1} parent=11 // pred_region
          _
        $region28: #{tpu_custom_call.1} parent=11 // pred_fallthru
          _
        // Predicated region
        $region29: #{tpu_custom_call.1} parent=11 // pred_check
          %p221 = pneg %p147
        $region30: #{tpu_custom_call.1} parent=11 // pred_check_branch
          %223 = sbr.rel (%p221) target = $region32
        $region31: #{tpu_custom_call.1} parent=11 // pred_region
          _
        $region32: #{tpu_custom_call.1} parent=11 // pred_fallthru
          _
        // Predicated region
        $region33: #{tpu_custom_call.1} parent=11 // pred_check
          %p224 = pneg %p168
        $region34: #{tpu_custom_call.1} parent=11 // pred_check_branch
          %226 = sbr.rel (%p224) target = $region36
        $region35: #{tpu_custom_call.1} parent=11 // pred_region
          _
        $region36: #{tpu_custom_call.1} parent=11 // pred_fallthru
          _
      $region12: #{tpu_custom_call.1} parent=5 // pred_fallthru
        _
      %p227 = scmp.lt.s32.totalorder %s16, 2
      // Predicated region
      $region37: #{tpu_custom_call.1} parent=5 // pred_check
        %p228 = pneg %p227
      $region38: #{tpu_custom_call.1} parent=5 // pred_check_branch
        %230 = sbr.rel (%p228) target = $region40
      $region39: #{tpu_custom_call.1} parent=5 // pred_region
        // Predicated region
        $region41: #{tpu_custom_call.1} parent=39 // pred_check
          %p231 = pneg %p36
        $region42: #{tpu_custom_call.1} parent=39 // pred_check_branch
          %233 = sbr.rel (%p231) target = $region44
        $region43: #{tpu_custom_call.1} parent=39 // pred_region
          %s234 = smul.u32 64, %s16
          %p235 = scmp.lt.s32.totalorder %s234, 127
          %s236 = scalar_select %p235, %s234, 127
          %s237 = smul.addr %s236, 8
          %s238 = scalar_lea.vmem %s0, %s237
          %s239 = smul.u32 64, %s16
        $region44: #{tpu_custom_call.1} parent=39 // pred_fallthru
          _
      $region40: #{tpu_custom_call.1} parent=5 // pred_fallthru
        _
      %p240 = scmp.le.s32.totalorder 1, %s16
      %p241 = scmp.lt.s32.totalorder %s16, 3
      %p242 = pnand %p240, %p241
      %p243 = pneg %p242
      // Predicated region
      $region45: #{tpu_custom_call.1} parent=5 // pred_check
        _
      $region46: #{tpu_custom_call.1} parent=5 // pred_check_branch
        %245 = sbr.rel (%p242) target = $region48
      $region47: #{tpu_custom_call.1} parent=5 // pred_region
        %s246 = ssub.s32 %s16, 1
        %s247 = smul.u32 64, %s21
        %p248 = scmp.lt.s32.totalorder %s247, 127
        %s249 = scalar_select %p248, %s247, 127
        %s250 = smul.addr %s249, 8
        %s251 = scalar_lea.vmem %s0, %s250
        %p252 = pneg %p42
        %p253 = pneg %p39
        %p254 = pneg %p63
        %p255 = pneg %p60
        %p256 = pneg %p84
        %p257 = pneg %p81
        %p258 = pneg %p105
        %p259 = pneg %p102
        %p260 = pneg %p126
        %p261 = pneg %p123
        %p262 = pneg %p147
        %p263 = pneg %p144
        %p264 = pneg %p168
        %p265 = pneg %p165
        %p266 = pneg %p194
        %p267 = pneg %p191
        %s268 = sand.u32 %s181, 1
        %s269 = scalar_lea.sflag [#allocation3], %s268
        %s270 = sand.u32 %s181, 1
        %s271 = smul.addr %s270, 512
        %s272 = scalar_lea.vmem [#allocation2], %s271
        %s273 = smul.u32 64, %s21
        %p274 = scmp.lt.s32.totalorder %s273, 127
        %s275 = scalar_select %p274, %s273, 127
        %s276 = smul.addr %s275, 8
        %s277 = scalar_lea.vmem %s0, %s276
        %s278 = smul.u32 64, %s21
        %s279 = smul.u32 64, %s21
        %v280 = vld [vmem:[%s277] sm:$0xff]
        %v281 = vld [vmem:[%s277 + $0x8] sm:$0xff]
        %v282 = vld [vmem:[%s277 + $0x10] sm:$0xff]
        %v283 = vld [vmem:[%s277 + $0x18] sm:$0xff]
        %v284 = vld [vmem:[%s277 + $0x20] sm:$0xff]
        %v285 = vld [vmem:[%s277 + $0x28] sm:$0xff]
        %v286 = vld [vmem:[%s277 + $0x30] sm:$0xff]
        %v287 = vld [vmem:[%s277 + $0x38] sm:$0xff]
        %v288 = vld [vmem:[%s277 + $0x40] sm:$0xff]
        %v289 = vld [vmem:[%s277 + $0x48] sm:$0xff]
        %v290 = vld [vmem:[%s277 + $0x50] sm:$0xff]
        %v291 = vld [vmem:[%s277 + $0x58] sm:$0xff]
        %v292 = vld [vmem:[%s277 + $0x60] sm:$0xff]
        %v293 = vld [vmem:[%s277 + $0x68] sm:$0xff]
        %v294 = vld [vmem:[%s277 + $0x70] sm:$0xff]
        %v295 = vld [vmem:[%s277 + $0x78] sm:$0xff]
        %v296 = vld [vmem:[%s277 + $0x80] sm:$0xff]
        %v297 = vld [vmem:[%s277 + $0x88] sm:$0xff]
        %v298 = vld [vmem:[%s277 + $0x90] sm:$0xff]
        %v299 = vld [vmem:[%s277 + $0x98] sm:$0xff]
        %v300 = vld [vmem:[%s277 + $0xa0] sm:$0xff]
        %v301 = vld [vmem:[%s277 + $0xa8] sm:$0xff]
        %v302 = vld [vmem:[%s277 + $0xb0] sm:$0xff]
        %v303 = vld [vmem:[%s277 + $0xb8] sm:$0xff]
        %v304 = vld [vmem:[%s277 + $0xc0] sm:$0xff]
        %v305 = vld [vmem:[%s277 + $0xc8] sm:$0xff]
        %v306 = vld [vmem:[%s277 + $0xd0] sm:$0xff]
        %v307 = vld [vmem:[%s277 + $0xd8] sm:$0xff]
        %v308 = vld [vmem:[%s277 + $0xe0] sm:$0xff]
        %v309 = vld [vmem:[%s277 + $0xe8] sm:$0xff]
        %v310 = vld [vmem:[%s277 + $0xf0] sm:$0xff]
        %v311 = vld [vmem:[%s277 + $0xf8] sm:$0xff]
        %v312 = vld [vmem:[%s277 + $0x100] sm:$0xff]
        %v313 = vld [vmem:[%s277 + $0x108] sm:$0xff]
        %v314 = vld [vmem:[%s277 + $0x110] sm:$0xff]
        %v315 = vld [vmem:[%s277 + $0x118] sm:$0xff]
        %v316 = vld [vmem:[%s277 + $0x120] sm:$0xff]
        %v317 = vld [vmem:[%s277 + $0x128] sm:$0xff]
        %v318 = vld [vmem:[%s277 + $0x130] sm:$0xff]
        %v319 = vld [vmem:[%s277 + $0x138] sm:$0xff]
        %v320 = vld [vmem:[%s277 + $0x140] sm:$0xff]
        %v321 = vld [vmem:[%s277 + $0x148] sm:$0xff]
        %v322 = vld [vmem:[%s277 + $0x150] sm:$0xff]
        %v323 = vld [vmem:[%s277 + $0x158] sm:$0xff]
        %v324 = vld [vmem:[%s277 + $0x160] sm:$0xff]
        %v325 = vld [vmem:[%s277 + $0x168] sm:$0xff]
        %v326 = vld [vmem:[%s277 + $0x170] sm:$0xff]
        %v327 = vld [vmem:[%s277 + $0x178] sm:$0xff]
        %v328 = vld [vmem:[%s277 + $0x180] sm:$0xff]
        %v329 = vld [vmem:[%s277 + $0x188] sm:$0xff]
        %v330 = vld [vmem:[%s277 + $0x190] sm:$0xff]
        %v331 = vld [vmem:[%s277 + $0x198] sm:$0xff]
        %v332 = vld [vmem:[%s277 + $0x1a0] sm:$0xff]
        %v333 = vld [vmem:[%s277 + $0x1a8] sm:$0xff]
        %v334 = vld [vmem:[%s277 + $0x1b0] sm:$0xff]
        %v335 = vld [vmem:[%s277 + $0x1b8] sm:$0xff]
        %v336 = vld [vmem:[%s277 + $0x1c0] sm:$0xff]
        %v337 = vld [vmem:[%s277 + $0x1c8] sm:$0xff]
        %v338 = vld [vmem:[%s277 + $0x1d0] sm:$0xff]
        %v339 = vld [vmem:[%s277 + $0x1d8] sm:$0xff]
        %v340 = vld [vmem:[%s277 + $0x1e0] sm:$0xff]
        %v341 = vld [vmem:[%s277 + $0x1e8] sm:$0xff]
        %v342 = vld [vmem:[%s277 + $0x1f0] sm:$0xff]
        %v343 = vld [vmem:[%s277 + $0x1f8] sm:$0xff]
        %v344 = vld [vmem:[%s2] sm:$0x1]
        %v345 = vld [vmem:[%s4] sm:$0x1]
        %v346 = vld [vmem:[%s6] sm:$0x1]
        %v347 = vld [vmem:[%s1] sm:$0xff]
        %v348 = vld [vmem:[%s1 + $0x8] sm:$0xff]
        %v350 = vlaneseq
        %v351 = vshrl.u32 %v350, 7
        %v352 = vsub.s32 0, %v351
        %v353 = vrot.slane %v344, %v352
        %vm355 = vcmask 130048
        %v357 = vsel %vm355, %v280, 0
        %v360 = vsel %vm355, %v281, 0
        %v363 = vsel %vm355, %v282, 0
        %v366 = vsel %vm355, %v283, 0
        %v369 = vsel %vm355, %v284, 0
        %v372 = vsel %vm355, %v285, 0
        %v375 = vsel %vm355, %v286, 0
        %v378 = vsel %vm355, %v287, 0
        %v381 = vsel %vm355, %v288, 0
        %v384 = vsel %vm355, %v289, 0
        %v387 = vsel %vm355, %v290, 0
        %v390 = vsel %vm355, %v291, 0
        %v393 = vsel %vm355, %v292, 0
        %v396 = vsel %vm355, %v293, 0
        %v399 = vsel %vm355, %v294, 0
        %v402 = vsel %vm355, %v295, 0
        %v405 = vsel %vm355, %v296, 0
        %v408 = vsel %vm355, %v297, 0
        %v411 = vsel %vm355, %v298, 0
        %v414 = vsel %vm355, %v299, 0
        %v417 = vsel %vm355, %v300, 0
        %v420 = vsel %vm355, %v301, 0
        %v423 = vsel %vm355, %v302, 0
        %v426 = vsel %vm355, %v303, 0
        %v429 = vsel %vm355, %v304, 0
        %v432 = vsel %vm355, %v305, 0
        %v435 = vsel %vm355, %v306, 0
        %v438 = vsel %vm355, %v307, 0
        %v441 = vsel %vm355, %v308, 0
        %v444 = vsel %vm355, %v309, 0
        %v447 = vsel %vm355, %v310, 0
        %v450 = vsel %vm355, %v311, 0
        %v453 = vsel %vm355, %v312, 0
        %v456 = vsel %vm355, %v313, 0
        %v459 = vsel %vm355, %v314, 0
        %v462 = vsel %vm355, %v315, 0
        %v465 = vsel %vm355, %v316, 0
        %v468 = vsel %vm355, %v317, 0
        %v471 = vsel %vm355, %v318, 0
        %v474 = vsel %vm355, %v319, 0
        %v477 = vsel %vm355, %v320, 0
        %v480 = vsel %vm355, %v321, 0
        %v483 = vsel %vm355, %v322, 0
        %v486 = vsel %vm355, %v323, 0
        %v489 = vsel %vm355, %v324, 0
        %v492 = vsel %vm355, %v325, 0
        %v495 = vsel %vm355, %v326, 0
        %v498 = vsel %vm355, %v327, 0
        %v501 = vsel %vm355, %v328, 0
        %v504 = vsel %vm355, %v329, 0
        %v507 = vsel %vm355, %v330, 0
        %v510 = vsel %vm355, %v331, 0
        %v513 = vsel %vm355, %v332, 0
        %v516 = vsel %vm355, %v333, 0
        %v519 = vsel %vm355, %v334, 0
        %v522 = vsel %vm355, %v335, 0
        %v525 = vsel %vm355, %v336, 0
        %v528 = vsel %vm355, %v337, 0
        %v531 = vsel %vm355, %v338, 0
        %v534 = vsel %vm355, %v339, 0
        %v537 = vsel %vm355, %v340, 0
        %v540 = vsel %vm355, %v341, 0
        %v543 = vsel %vm355, %v342, 0
        %v546 = vsel %vm355, %v343, 0
        %548 = vmatprep.subr.mxu0 0.0
        %549 = vmatpush1.msra.mxu0 %v347
        %550 = vmatprep.subr.mxu0 0.0
        %551 = vmatpush1.msra.mxu0 %v348
        %552 = vmatprep.subr.mxu0 0.0
        %553 = vmatpush1.msra.mxu0 0.0
        %554 = vmatprep.subr.mxu0 0.0
        %555 = vmatpush1.msra.mxu0 0.0
        %556 = vmatprep.subr.mxu0 0.0
        %557 = vmatpush1.msra.mxu0 0.0
        %558 = vmatprep.subr.mxu0 0.0
        %559 = vmatpush1.msra.mxu0 0.0
        %560 = vmatprep.subr.mxu0 0.0
        %561 = vmatpush1.msra.mxu0 0.0
        %562 = vmatprep.subr.mxu0 0.0
        %563 = vmatpush1.msra.mxu0 0.0
        %564 = vmatprep.subr.mxu0 0.0
        %565 = vmatpush1.msra.mxu0 0.0
        %566 = vmatprep.subr.mxu0 0.0
        %567 = vmatpush1.msra.mxu0 0.0
        %568 = vmatprep.subr.mxu0 0.0
        %569 = vmatpush1.msra.mxu0 0.0
        %570 = vmatprep.subr.mxu0 0.0
        %571 = vmatpush1.msra.mxu0 0.0
        %572 = vmatprep.subr.mxu0 0.0
        %573 = vmatpush1.msra.mxu0 0.0
        %574 = vmatprep.subr.mxu0 0.0
        %575 = vmatpush1.msra.mxu0 0.0
        %576 = vmatprep.subr.mxu0 0.0
        %577 = vmatpush1.msra.mxu0 0.0
        %578 = vmatprep.subr.mxu0 0.0
        %579 = vmatpush1.msra.mxu0 0.0
        %580 = vmatprep.subr.mxu0 0.0
        %581 = vmatpush1.msra.mxu0 0.0
        %582 = vmatprep.subr.mxu0 0.0
        %583 = vmatpush1.msra.mxu0 0.0
        %584 = vmatprep.subr.mxu0 0.0
        %585 = vmatpush1.msra.mxu0 0.0
        %586 = vmatprep.subr.mxu0 0.0
        %587 = vmatpush1.msra.mxu0 0.0
        %588 = vmatprep.subr.mxu0 0.0
        %589 = vmatpush1.msra.mxu0 0.0
        %590 = vmatprep.subr.mxu0 0.0
        %591 = vmatpush1.msra.mxu0 0.0
        %592 = vmatprep.subr.mxu0 0.0
        %593 = vmatpush1.msra.mxu0 0.0
        %594 = vmatprep.subr.mxu0 0.0
        %595 = vmatpush1.msra.mxu0 0.0
        %596 = vmatprep.subr.mxu0 0.0
        %597 = vmatpush1.msra.mxu0 0.0
        %598 = vmatprep.subr.mxu0 0.0
        %599 = vmatpush1.msra.mxu0 0.0
        %600 = vmatprep.subr.mxu0 0.0
        %601 = vmatpush1.msra.mxu0 0.0
        %602 = vmatprep.subr.mxu0 0.0
        %603 = vmatpush1.msra.mxu0 0.0
        %604 = vmatprep.subr.mxu0 0.0
        %605 = vmatpush1.msra.mxu0 0.0
        %606 = vmatprep.subr.mxu0 0.0
        %607 = vmatpush1.msra.mxu0 0.0
        %608 = vmatprep.subr.mxu0 0.0
        %609 = vmatpush1.msra.mxu0 0.0
        %610 = vmatprep.subr.mxu0 0.0
        %611 = vmatpush1.msra.mxu0 0.0
        %612 = vmatprep.mubr.f32.mxu0 0.0
        %613 = vmatmul.mubr.f32.gmra.mrb[0].mxu0 %v357
        %v614 = vpop.f32.mrb[0].mxu0
        %v615 = vadd.f32 %v353, %v614
        %v616 = vpop.f32.mrb[0].mxu0
        %617 = vmatprep.mubr.f32.mxu0 0.0
        %618 = vmatmul.mubr.f32.gmra.mrb[0].mxu0 %v360
        %v619 = vpop.f32.mrb[0].mxu0
        %v620 = vadd.f32 %v353, %v619
        %v621 = vpop.f32.mrb[0].mxu0
        %622 = vmatprep.mubr.f32.mxu0 0.0
        %623 = vmatmul.mubr.f32.gmra.mrb[0].mxu0 %v363
        %v624 = vpop.f32.mrb[0].mxu0
        %v625 = vadd.f32 %v353, %v624
        %v626 = vpop.f32.mrb[0].mxu0
        %627 = vmatprep.mubr.f32.mxu0 0.0
        %628 = vmatmul.mubr.f32.gmra.mrb[0].mxu0 %v366
        %v629 = vpop.f32.mrb[0].mxu0
        %v630 = vadd.f32 %v353, %v629
        %v631 = vpop.f32.mrb[0].mxu0
        %632 = vmatprep.mubr.f32.mxu0 0.0
        %633 = vmatmul.mubr.f32.gmra.mrb[0].mxu0 %v369
        %v634 = vpop.f32.mrb[0].mxu0
        %v635 = vadd.f32 %v353, %v634
        %v636 = vpop.f32.mrb[0].mxu0
        %637 = vmatprep.mubr.f32.mxu0 0.0
        %638 = vmatmul.mubr.f32.gmra.mrb[0].mxu0 %v372
        %v639 = vpop.f32.mrb[0].mxu0
        %v640 = vadd.f32 %v353, %v639
        %v641 = vpop.f32.mrb[0].mxu0
        %642 = vmatprep.mubr.f32.mxu0 0.0
        %643 = vmatmul.mubr.f32.gmra.mrb[0].mxu0 %v375
        %v644 = vpop.f32.mrb[0].mxu0
        %v645 = vadd.f32 %v353, %v644
        %v646 = vpop.f32.mrb[0].mxu0
        %647 = vmatprep.mubr.f32.mxu0 0.0
        %648 = vmatmul.mubr.f32.gmra.mrb[0].mxu0 %v378
        %v649 = vpop.f32.mrb[0].mxu0
        %v650 = vadd.f32 %v353, %v649
        %v651 = vpop.f32.mrb[0].mxu0
        %652 = vmatprep.mubr.f32.mxu0 0.0
        %653 = vmatmul.mubr.f32.gmra.mrb[0].mxu0 %v381
        %v654 = vpop.f32.mrb[0].mxu0
        %v655 = vadd.f32 %v353, %v654
        %v656 = vpop.f32.mrb[0].mxu0
        %657 = vmatprep.mubr.f32.mxu0 0.0
        %658 = vmatmul.mubr.f32.gmra.mrb[0].mxu0 %v384
        %v659 = vpop.f32.mrb[0].mxu0
        %v660 = vadd.f32 %v353, %v659
        %v661 = vpop.f32.mrb[0].mxu0
        %662 = vmatprep.mubr.f32.mxu0 0.0
        %663 = vmatmul.mubr.f32.gmra.mrb[0].mxu0 %v387
        %v664 = vpop.f32.mrb[0].mxu0
        %v665 = vadd.f32 %v353, %v664
        %v666 = vpop.f32.mrb[0].mxu0
        %667 = vmatprep.mubr.f32.mxu0 0.0
        %668 = vmatmul.mubr.f32.gmra.mrb[0].mxu0 %v390
        %v669 = vpop.f32.mrb[0].mxu0
        %v670 = vadd.f32 %v353, %v669
        %v671 = vpop.f32.mrb[0].mxu0
        %672 = vmatprep.mubr.f32.mxu0 0.0
        %673 = vmatmul.mubr.f32.gmra.mrb[0].mxu0 %v393
        %v674 = vpop.f32.mrb[0].mxu0
        %v675 = vadd.f32 %v353, %v674
        %v676 = vpop.f32.mrb[0].mxu0
        %677 = vmatprep.mubr.f32.mxu0 0.0
        %678 = vmatmul.mubr.f32.gmra.mrb[0].mxu0 %v396
        %v679 = vpop.f32.mrb[0].mxu0
        %v680 = vadd.f32 %v353, %v679
        %v681 = vpop.f32.mrb[0].mxu0
        %682 = vmatprep.mubr.f32.mxu0 0.0
        %683 = vmatmul.mubr.f32.gmra.mrb[0].mxu0 %v399
        %v684 = vpop.f32.mrb[0].mxu0
        %v685 = vadd.f32 %v353, %v684
        %v686 = vpop.f32.mrb[0].mxu0
        %687 = vmatprep.mubr.f32.mxu0 0.0
        %688 = vmatmul.mubr.f32.gmra.mrb[0].mxu0 %v402
        %v689 = vpop.f32.mrb[0].mxu0
        %v690 = vadd.f32 %v353, %v689
        %v691 = vpop.f32.mrb[0].mxu0
        %692 = vmatprep.mubr.f32.mxu0 0.0
        %693 = vmatmul.mubr.f32.gmra.mrb[0].mxu0 %v405
        %v694 = vpop.f32.mrb[0].mxu0
        %v695 = vadd.f32 %v353, %v694
        %v696 = vpop.f32.mrb[0].mxu0
        %697 = vmatprep.mubr.f32.mxu0 0.0
        %698 = vmatmul.mubr.f32.gmra.mrb[0].mxu0 %v408
        %v699 = vpop.f32.mrb[0].mxu0
        %v700 = vadd.f32 %v353, %v699
        %v701 = vpop.f32.mrb[0].mxu0
        %702 = vmatprep.mubr.f32.mxu0 0.0
        %703 = vmatmul.mubr.f32.gmra.mrb[0].mxu0 %v411
        %v704 = vpop.f32.mrb[0].mxu0
        %v705 = vadd.f32 %v353, %v704
        %v706 = vpop.f32.mrb[0].mxu0
        %707 = vmatprep.mubr.f32.mxu0 0.0
        %708 = vmatmul.mubr.f32.gmra.mrb[0].mxu0 %v414
        %v709 = vpop.f32.mrb[0].mxu0
        %v710 = vadd.f32 %v353, %v709
        %v711 = vpop.f32.mrb[0].mxu0
        %712 = vmatprep.mubr.f32.mxu0 0.0
        %713 = vmatmul.mubr.f32.gmra.mrb[0].mxu0 %v417
        %v714 = vpop.f32.mrb[0].mxu0
        %v715 = vadd.f32 %v353, %v714
        %v716 = vpop.f32.mrb[0].mxu0
        %717 = vmatprep.mubr.f32.mxu0 0.0
        %718 = vmatmul.mubr.f32.gmra.mrb[0].mxu0 %v420
        %v719 = vpop.f32.mrb[0].mxu0
        %v720 = vadd.f32 %v353, %v719
        %v721 = vpop.f32.mrb[0].mxu0
        %722 = vmatprep.mubr.f32.mxu0 0.0
        %723 = vmatmul.mubr.f32.gmra.mrb[0].mxu0 %v423
        %v724 = vpop.f32.mrb[0].mxu0
        %v725 = vadd.f32 %v353, %v724
        %v726 = vpop.f32.mrb[0].mxu0
        %727 = vmatprep.mubr.f32.mxu0 0.0
        %728 = vmatmul.mubr.f32.gmra.mrb[0].mxu0 %v426
        %v729 = vpop.f32.mrb[0].mxu0
        %v730 = vadd.f32 %v353, %v729
        %v731 = vpop.f32.mrb[0].mxu0
        %732 = vmatprep.mubr.f32.mxu0 0.0
        %733 = vmatmul.mubr.f32.gmra.mrb[0].mxu0 %v429
        %v734 = vpop.f32.mrb[0].mxu0
        %v735 = vadd.f32 %v353, %v734
        %v736 = vpop.f32.mrb[0].mxu0
        %737 = vmatprep.mubr.f32.mxu0 0.0
        %738 = vmatmul.mubr.f32.gmra.mrb[0].mxu0 %v432
        %v739 = vpop.f32.mrb[0].mxu0
        %v740 = vadd.f32 %v353, %v739
        %v741 = vpop.f32.mrb[0].mxu0
        %742 = vmatprep.mubr.f32.mxu0 0.0
        %743 = vmatmul.mubr.f32.gmra.mrb[0].mxu0 %v435
        %v744 = vpop.f32.mrb[0].mxu0
        %v745 = vadd.f32 %v353, %v744
        %v746 = vpop.f32.mrb[0].mxu0
        %747 = vmatprep.mubr.f32.mxu0 0.0
        %748 = vmatmul.mubr.f32.gmra.mrb[0].mxu0 %v438
        %v749 = vpop.f32.mrb[0].mxu0
        %v750 = vadd.f32 %v353, %v749
        %v751 = vpop.f32.mrb[0].mxu0
        %752 = vmatprep.mubr.f32.mxu0 0.0
        %753 = vmatmul.mubr.f32.gmra.mrb[0].mxu0 %v441
        %v754 = vpop.f32.mrb[0].mxu0
        %v755 = vadd.f32 %v353, %v754
        %v756 = vpop.f32.mrb[0].mxu0
        %757 = vmatprep.mubr.f32.mxu0 0.0
        %758 = vmatmul.mubr.f32.gmra.mrb[0].mxu0 %v444
        %v759 = vpop.f32.mrb[0].mxu0
        %v760 = vadd.f32 %v353, %v759
        %v761 = vpop.f32.mrb[0].mxu0
        %762 = vmatprep.mubr.f32.mxu0 0.0
        %763 = vmatmul.mubr.f32.gmra.mrb[0].mxu0 %v447
        %v764 = vpop.f32.mrb[0].mxu0
        %v765 = vadd.f32 %v353, %v764
        %v766 = vpop.f32.mrb[0].mxu0
        %767 = vmatprep.mubr.f32.mxu0 0.0
        %768 = vmatmul.mubr.f32.gmra.mrb[0].mxu0 %v450
        %v769 = vpop.f32.mrb[0].mxu0
        %v770 = vadd.f32 %v353, %v769
        %v771 = vpop.f32.mrb[0].mxu0
        %772 = vmatprep.mubr.f32.mxu0 0.0
        %773 = vmatmul.mubr.f32.gmra.mrb[0].mxu0 %v453
        %v774 = vpop.f32.mrb[0].mxu0
        %v775 = vadd.f32 %v353, %v774
        %v776 = vpop.f32.mrb[0].mxu0
        %777 = vmatprep.mubr.f32.mxu0 0.0
        %778 = vmatmul.mubr.f32.gmra.mrb[0].mxu0 %v456
        %v779 = vpop.f32.mrb[0].mxu0
        %v780 = vadd.f32 %v353, %v779
        %v781 = vpop.f32.mrb[0].mxu0
        %782 = vmatprep.mubr.f32.mxu0 0.0
        %783 = vmatmul.mubr.f32.gmra.mrb[0].mxu0 %v459
        %v784 = vpop.f32.mrb[0].mxu0
        %v785 = vadd.f32 %v353, %v784
        %v786 = vpop.f32.mrb[0].mxu0
        %787 = vmatprep.mubr.f32.mxu0 0.0
        %788 = vmatmul.mubr.f32.gmra.mrb[0].mxu0 %v462
        %v789 = vpop.f32.mrb[0].mxu0
        %v790 = vadd.f32 %v353, %v789
        %v791 = vpop.f32.mrb[0].mxu0
        %792 = vmatprep.mubr.f32.mxu0 0.0
        %793 = vmatmul.mubr.f32.gmra.mrb[0].mxu0 %v465
        %v794 = vpop.f32.mrb[0].mxu0
        %v795 = vadd.f32 %v353, %v794
        %v796 = vpop.f32.mrb[0].mxu0
        %797 = vmatprep.mubr.f32.mxu0 0.0
        %798 = vmatmul.mubr.f32.gmra.mrb[0].mxu0 %v468
        %v799 = vpop.f32.mrb[0].mxu0
        %v800 = vadd.f32 %v353, %v799
        %v801 = vpop.f32.mrb[0].mxu0
        %802 = vmatprep.mubr.f32.mxu0 0.0
        %803 = vmatmul.mubr.f32.gmra.mrb[0].mxu0 %v471
        %v804 = vpop.f32.mrb[0].mxu0
        %v805 = vadd.f32 %v353, %v804
        %v806 = vpop.f32.mrb[0].mxu0
        %807 = vmatprep.mubr.f32.mxu0 0.0
        %808 = vmatmul.mubr.f32.gmra.mrb[0].mxu0 %v474
        %v809 = vpop.f32.mrb[0].mxu0
        %v810 = vadd.f32 %v353, %v809
        %v811 = vpop.f32.mrb[0].mxu0
        %812 = vmatprep.mubr.f32.mxu0 0.0
        %813 = vmatmul.mubr.f32.gmra.mrb[0].mxu0 %v477
        %v814 = vpop.f32.mrb[0].mxu0
        %v815 = vadd.f32 %v353, %v814
        %v816 = vpop.f32.mrb[0].mxu0
        %817 = vmatprep.mubr.f32.mxu0 0.0
        %818 = vmatmul.mubr.f32.gmra.mrb[0].mxu0 %v480
        %v819 = vpop.f32.mrb[0].mxu0
        %v820 = vadd.f32 %v353, %v819
        %v821 = vpop.f32.mrb[0].mxu0
        %822 = vmatprep.mubr.f32.mxu0 0.0
        %823 = vmatmul.mubr.f32.gmra.mrb[0].mxu0 %v483
        %v824 = vpop.f32.mrb[0].mxu0
        %v825 = vadd.f32 %v353, %v824
        %v826 = vpop.f32.mrb[0].mxu0
        %827 = vmatprep.mubr.f32.mxu0 0.0
        %828 = vmatmul.mubr.f32.gmra.mrb[0].mxu0 %v486
        %v829 = vpop.f32.mrb[0].mxu0
        %v830 = vadd.f32 %v353, %v829
        %v831 = vpop.f32.mrb[0].mxu0
        %832 = vmatprep.mubr.f32.mxu0 0.0
        %833 = vmatmul.mubr.f32.gmra.mrb[0].mxu0 %v489
        %v834 = vpop.f32.mrb[0].mxu0
        %v835 = vadd.f32 %v353, %v834
        %v836 = vpop.f32.mrb[0].mxu0
        %837 = vmatprep.mubr.f32.mxu0 0.0
        %838 = vmatmul.mubr.f32.gmra.mrb[0].mxu0 %v492
        %v839 = vpop.f32.mrb[0].mxu0
        %v840 = vadd.f32 %v353, %v839
        %v841 = vpop.f32.mrb[0].mxu0
        %842 = vmatprep.mubr.f32.mxu0 0.0
        %843 = vmatmul.mubr.f32.gmra.mrb[0].mxu0 %v495
        %v844 = vpop.f32.mrb[0].mxu0
        %v845 = vadd.f32 %v353, %v844
        %v846 = vpop.f32.mrb[0].mxu0
        %847 = vmatprep.mubr.f32.mxu0 0.0
        %848 = vmatmul.mubr.f32.gmra.mrb[0].mxu0 %v498
        %v849 = vpop.f32.mrb[0].mxu0
        %v850 = vadd.f32 %v353, %v849
        %v851 = vpop.f32.mrb[0].mxu0
        %852 = vmatprep.mubr.f32.mxu0 0.0
        %853 = vmatmul.mubr.f32.gmra.mrb[0].mxu0 %v501
        %v854 = vpop.f32.mrb[0].mxu0
        %v855 = vadd.f32 %v353, %v854
        %v856 = vpop.f32.mrb[0].mxu0
        %857 = vmatprep.mubr.f32.mxu0 0.0
        %858 = vmatmul.mubr.f32.gmra.mrb[0].mxu0 %v504
        %v859 = vpop.f32.mrb[0].mxu0
        %v860 = vadd.f32 %v353, %v859
        %v861 = vpop.f32.mrb[0].mxu0
        %862 = vmatprep.mubr.f32.mxu0 0.0
        %863 = vmatmul.mubr.f32.gmra.mrb[0].mxu0 %v507
        %v864 = vpop.f32.mrb[0].mxu0
        %v865 = vadd.f32 %v353, %v864
        %v866 = vpop.f32.mrb[0].mxu0
        %867 = vmatprep.mubr.f32.mxu0 0.0
        %868 = vmatmul.mubr.f32.gmra.mrb[0].mxu0 %v510
        %v869 = vpop.f32.mrb[0].mxu0
        %v870 = vadd.f32 %v353, %v869
        %v871 = vpop.f32.mrb[0].mxu0
        %872 = vmatprep.mubr.f32.mxu0 0.0
        %873 = vmatmul.mubr.f32.gmra.mrb[0].mxu0 %v513
        %v874 = vpop.f32.mrb[0].mxu0
        %v875 = vadd.f32 %v353, %v874
        %v876 = vpop.f32.mrb[0].mxu0
        %877 = vmatprep.mubr.f32.mxu0 0.0
        %878 = vmatmul.mubr.f32.gmra.mrb[0].mxu0 %v516
        %v879 = vpop.f32.mrb[0].mxu0
        %v880 = vadd.f32 %v353, %v879
        %v881 = vpop.f32.mrb[0].mxu0
        %882 = vmatprep.mubr.f32.mxu0 0.0
        %883 = vmatmul.mubr.f32.gmra.mrb[0].mxu0 %v519
        %v884 = vpop.f32.mrb[0].mxu0
        %v885 = vadd.f32 %v353, %v884
        %v886 = vpop.f32.mrb[0].mxu0
        %887 = vmatprep.mubr.f32.mxu0 0.0
        %888 = vmatmul.mubr.f32.gmra.mrb[0].mxu0 %v522
        %v889 = vpop.f32.mrb[0].mxu0
        %v890 = vadd.f32 %v353, %v889
        %v891 = vpop.f32.mrb[0].mxu0
        %892 = vmatprep.mubr.f32.mxu0 0.0
        %893 = vmatmul.mubr.f32.gmra.mrb[0].mxu0 %v525
        %v894 = vpop.f32.mrb[0].mxu0
        %v895 = vadd.f32 %v353, %v894
        %v896 = vpop.f32.mrb[0].mxu0
        %897 = vmatprep.mubr.f32.mxu0 0.0
        %898 = vmatmul.mubr.f32.gmra.mrb[0].mxu0 %v528
        %v899 = vpop.f32.mrb[0].mxu0
        %v900 = vadd.f32 %v353, %v899
        %v901 = vpop.f32.mrb[0].mxu0
        %902 = vmatprep.mubr.f32.mxu0 0.0
        %903 = vmatmul.mubr.f32.gmra.mrb[0].mxu0 %v531
        %v904 = vpop.f32.mrb[0].mxu0
        %v905 = vadd.f32 %v353, %v904
        %v906 = vpop.f32.mrb[0].mxu0
        %907 = vmatprep.mubr.f32.mxu0 0.0
        %908 = vmatmul.mubr.f32.gmra.mrb[0].mxu0 %v534
        %v909 = vpop.f32.mrb[0].mxu0
        %v910 = vadd.f32 %v353, %v909
        %v911 = vpop.f32.mrb[0].mxu0
        %912 = vmatprep.mubr.f32.mxu0 0.0
        %913 = vmatmul.mubr.f32.gmra.mrb[0].mxu0 %v537
        %v914 = vpop.f32.mrb[0].mxu0
        %v915 = vadd.f32 %v353, %v914
        %v916 = vpop.f32.mrb[0].mxu0
        %917 = vmatprep.mubr.f32.mxu0 0.0
        %918 = vmatmul.mubr.f32.gmra.mrb[0].mxu0 %v540
        %v919 = vpop.f32.mrb[0].mxu0
        %v920 = vadd.f32 %v353, %v919
        %v921 = vpop.f32.mrb[0].mxu0
        %922 = vmatprep.mubr.f32.mxu0 0.0
        %923 = vmatmul.mubr.f32.gmra.mrb[0].mxu0 %v543
        %v924 = vpop.f32.mrb[0].mxu0
        %v925 = vadd.f32 %v353, %v924
        %v926 = vpop.f32.mrb[0].mxu0
        %927 = vmatprep.mubr.f32.mxu0 0.0
        %928 = vmatmul.mubr.f32.gmra.mrb[0].mxu0 %v546
        %v929 = vpop.f32.mrb[0].mxu0
        %v930 = vadd.f32 %v353, %v929
        %v931 = vpop.f32.mrb[0].mxu0
        %932 = vdwg.mxu0
        %v933 = vmax.f32 %v615, 0.0
        %v934 = vmax.f32 %v620, 0.0
        %v935 = vmax.f32 %v625, 0.0
        %v936 = vmax.f32 %v630, 0.0
        %v937 = vmax.f32 %v635, 0.0
        %v938 = vmax.f32 %v640, 0.0
        %v939 = vmax.f32 %v645, 0.0
        %v940 = vmax.f32 %v650, 0.0
        %v941 = vmax.f32 %v655, 0.0
        %v942 = vmax.f32 %v660, 0.0
        %v943 = vmax.f32 %v665, 0.0
        %v944 = vmax.f32 %v670, 0.0
        %v945 = vmax.f32 %v675, 0.0
        %v946 = vmax.f32 %v680, 0.0
        %v947 = vmax.f32 %v685, 0.0
        %v948 = vmax.f32 %v690, 0.0
        %v949 = vmax.f32 %v695, 0.0
        %v950 = vmax.f32 %v700, 0.0
        %v951 = vmax.f32 %v705, 0.0
        %v952 = vmax.f32 %v710, 0.0
        %v953 = vmax.f32 %v715, 0.0
        %v954 = vmax.f32 %v720, 0.0
        %v955 = vmax.f32 %v725, 0.0
        %v956 = vmax.f32 %v730, 0.0
        %v957 = vmax.f32 %v735, 0.0
        %v958 = vmax.f32 %v740, 0.0
        %v959 = vmax.f32 %v745, 0.0
        %v960 = vmax.f32 %v750, 0.0
        %v961 = vmax.f32 %v755, 0.0
        %v962 = vmax.f32 %v760, 0.0
        %v963 = vmax.f32 %v765, 0.0
        %v964 = vmax.f32 %v770, 0.0
        %v965 = vmax.f32 %v775, 0.0
        %v966 = vmax.f32 %v780, 0.0
        %v967 = vmax.f32 %v785, 0.0
        %v968 = vmax.f32 %v790, 0.0
        %v969 = vmax.f32 %v795, 0.0
        %v970 = vmax.f32 %v800, 0.0
        %v971 = vmax.f32 %v805, 0.0
        %v972 = vmax.f32 %v810, 0.0
        %v973 = vmax.f32 %v815, 0.0
        %v974 = vmax.f32 %v820, 0.0
        %v975 = vmax.f32 %v825, 0.0
        %v976 = vmax.f32 %v830, 0.0
        %v977 = vmax.f32 %v835, 0.0
        %v978 = vmax.f32 %v840, 0.0
        %v979 = vmax.f32 %v845, 0.0
        %v980 = vmax.f32 %v850, 0.0
        %v981 = vmax.f32 %v855, 0.0
        %v982 = vmax.f32 %v860, 0.0
        %v983 = vmax.f32 %v865, 0.0
        %v984 = vmax.f32 %v870, 0.0
        %v985 = vmax.f32 %v875, 0.0
        %v986 = vmax.f32 %v880, 0.0
        %v987 = vmax.f32 %v885, 0.0
        %v988 = vmax.f32 %v890, 0.0
        %v989 = vmax.f32 %v895, 0.0
        %v990 = vmax.f32 %v900, 0.0
        %v991 = vmax.f32 %v905, 0.0
        %v992 = vmax.f32 %v910, 0.0
        %v993 = vmax.f32 %v915, 0.0
        %v994 = vmax.f32 %v920, 0.0
        %v995 = vmax.f32 %v925, 0.0
        %v996 = vmax.f32 %v930, 0.0
        %v997 = vld [vmem:[%s3] sm:$0xff]
        %v998 = vld [vmem:[%s3 + $0x8] sm:$0xff]
        %v999 = vld [vmem:[%s3 + $0x10] sm:$0xff]
        %v1000 = vld [vmem:[%s3 + $0x18] sm:$0xff]
        %v1002 = vlaneseq
        %v1003 = vshrl.u32 %v1002, 7
        %v1004 = vsub.s32 0, %v1003
        %v1005 = vrot.slane %v345, %v1004
        %vm1007 = vcmask 261120
        %v1009 = vsel %vm1007, %v933, 0
        %v1012 = vsel %vm1007, %v934, 0
        %v1015 = vsel %vm1007, %v935, 0
        %v1018 = vsel %vm1007, %v936, 0
        %v1021 = vsel %vm1007, %v937, 0
        %v1024 = vsel %vm1007, %v938, 0
        %v1027 = vsel %vm1007, %v939, 0
        %v1030 = vsel %vm1007, %v940, 0
        %v1033 = vsel %vm1007, %v941, 0
        %v1036 = vsel %vm1007, %v942, 0
        %v1039 = vsel %vm1007, %v943, 0
        %v1042 = vsel %vm1007, %v944, 0
        %v1045 = vsel %vm1007, %v945, 0
        %v1048 = vsel %vm1007, %v946, 0
        %v1051 = vsel %vm1007, %v947, 0
        %v1054 = vsel %vm1007, %v948, 0
        %v1057 = vsel %vm1007, %v949, 0
        %v1060 = vsel %vm1007, %v950, 0
        %v1063 = vsel %vm1007, %v951, 0
        %v1066 = vsel %vm1007, %v952, 0
        %v1069 = vsel %vm1007, %v953, 0
        %v1072 = vsel %vm1007, %v954, 0
        %v1075 = vsel %vm1007, %v955, 0
        %v1078 = vsel %vm1007, %v956, 0
        %v1081 = vsel %vm1007, %v957, 0
        %v1084 = vsel %vm1007, %v958, 0
        %v1087 = vsel %vm1007, %v959, 0
        %v1090 = vsel %vm1007, %v960, 0
        %v1093 = vsel %vm1007, %v961, 0
        %v1096 = vsel %vm1007, %v962, 0
        %v1099 = vsel %vm1007, %v963, 0
        %v1102 = vsel %vm1007, %v964, 0
        %v1105 = vsel %vm1007, %v965, 0
        %v1108 = vsel %vm1007, %v966, 0
        %v1111 = vsel %vm1007, %v967, 0
        %v1114 = vsel %vm1007, %v968, 0
        %v1117 = vsel %vm1007, %v969, 0
        %v1120 = vsel %vm1007, %v970, 0
        %v1123 = vsel %vm1007, %v971, 0
        %v1126 = vsel %vm1007, %v972, 0
        %v1129 = vsel %vm1007, %v973, 0
        %v1132 = vsel %vm1007, %v974, 0
        %v1135 = vsel %vm1007, %v975, 0
        %v1138 = vsel %vm1007, %v976, 0
        %v1141 = vsel %vm1007, %v977, 0
        %v1144 = vsel %vm1007, %v978, 0
        %v1147 = vsel %vm1007, %v979, 0
        %v1150 = vsel %vm1007, %v980, 0
        %v1153 = vsel %vm1007, %v981, 0
        %v1156 = vsel %vm1007, %v982, 0
        %v1159 = vsel %vm1007, %v983, 0
        %v1162 = vsel %vm1007, %v984, 0
        %v1165 = vsel %vm1007, %v985, 0
        %v1168 = vsel %vm1007, %v986, 0
        %v1171 = vsel %vm1007, %v987, 0
        %v1174 = vsel %vm1007, %v988, 0
        %v1177 = vsel %vm1007, %v989, 0
        %v1180 = vsel %vm1007, %v990, 0
        %v1183 = vsel %vm1007, %v991, 0
        %v1186 = vsel %vm1007, %v992, 0
        %v1189 = vsel %vm1007, %v993, 0
        %v1192 = vsel %vm1007, %v994, 0
        %v1195 = vsel %vm1007, %v995, 0
        %v1198 = vsel %vm1007, %v996, 0
        %1200 = vmatprep.subr.mxu0 0.0
        %1201 = vmatpush1.msra.mxu0 %v997
        %1202 = vmatprep.subr.mxu0 0.0
        %1203 = vmatpush1.msra.mxu0 %v998
        %1204 = vmatprep.subr.mxu0 0.0
        %1205 = vmatpush1.msra.mxu0 %v999
        %1206 = vmatprep.subr.mxu0 0.0
        %1207 = vmatpush1.msra.mxu0 %v1000
        %1208 = vmatprep.subr.mxu0 0.0
        %1209 = vmatpush1.msra.mxu0 0.0
        %1210 = vmatprep.subr.mxu0 0.0
        %1211 = vmatpush1.msra.mxu0 0.0
        %1212 = vmatprep.subr.mxu0 0.0
        %1213 = vmatpush1.msra.mxu0 0.0
        %1214 = vmatprep.subr.mxu0 0.0
        %1215 = vmatpush1.msra.mxu0 0.0
        %1216 = vmatprep.subr.mxu0 0.0
        %1217 = vmatpush1.msra.mxu0 0.0
        %1218 = vmatprep.subr.mxu0 0.0
        %1219 = vmatpush1.msra.mxu0 0.0
        %1220 = vmatprep.subr.mxu0 0.0
        %1221 = vmatpush1.msra.mxu0 0.0
        %1222 = vmatprep.subr.mxu0 0.0
        %1223 = vmatpush1.msra.mxu0 0.0
        %1224 = vmatprep.subr.mxu0 0.0
        %1225 = vmatpush1.msra.mxu0 0.0
        %1226 = vmatprep.subr.mxu0 0.0
        %1227 = vmatpush1.msra.mxu0 0.0
        %1228 = vmatprep.subr.mxu0 0.0
        %1229 = vmatpush1.msra.mxu0 0.0
        %1230 = vmatprep.subr.mxu0 0.0
        %1231 = vmatpush1.msra.mxu0 0.0
        %1232 = vmatprep.subr.mxu0 0.0
        %1233 = vmatpush1.msra.mxu0 0.0
        %1234 = vmatprep.subr.mxu0 0.0
        %1235 = vmatpush1.msra.mxu0 0.0
        %1236 = vmatprep.subr.mxu0 0.0
        %1237 = vmatpush1.msra.mxu0 0.0
        %1238 = vmatprep.subr.mxu0 0.0
        %1239 = vmatpush1.msra.mxu0 0.0
        %1240 = vmatprep.subr.mxu0 0.0
        %1241 = vmatpush1.msra.mxu0 0.0
        %1242 = vmatprep.subr.mxu0 0.0
        %1243 = vmatpush1.msra.mxu0 0.0
        %1244 = vmatprep.subr.mxu0 0.0
        %1245 = vmatpush1.msra.mxu0 0.0
        %1246 = vmatprep.subr.mxu0 0.0
        %1247 = vmatpush1.msra.mxu0 0.0
        %1248 = vmatprep.subr.mxu0 0.0
        %1249 = vmatpush1.msra.mxu0 0.0
        %1250 = vmatprep.subr.mxu0 0.0
        %1251 = vmatpush1.msra.mxu0 0.0
        %1252 = vmatprep.subr.mxu0 0.0
        %1253 = vmatpush1.msra.mxu0 0.0
        %1254 = vmatprep.subr.mxu0 0.0
        %1255 = vmatpush1.msra.mxu0 0.0
        %1256 = vmatprep.subr.mxu0 0.0
        %1257 = vmatpush1.msra.mxu0 0.0
        %1258 = vmatprep.subr.mxu0 0.0
        %1259 = vmatpush1.msra.mxu0 0.0
        %1260 = vmatprep.subr.mxu0 0.0
        %1261 = vmatpush1.msra.mxu0 0.0
        %1262 = vmatprep.subr.mxu0 0.0
        %1263 = vmatpush1.msra.mxu0 0.0
        %1264 = vmatprep.mubr.f32.mxu0 0.0
        %1265 = vmatmul.mubr.f32.gmra.mrb[0].mxu0 %v1009
        %v1266 = vpop.f32.mrb[0].mxu0
        %v1267 = vadd.f32 %v1005, %v1266
        %v1268 = vpop.f32.mrb[0].mxu0
        %1269 = vmatprep.mubr.f32.mxu0 0.0
        %1270 = vmatmul.mubr.f32.gmra.mrb[0].mxu0 %v1012
        %v1271 = vpop.f32.mrb[0].mxu0
        %v1272 = vadd.f32 %v1005, %v1271
        %v1273 = vpop.f32.mrb[0].mxu0
        %1274 = vmatprep.mubr.f32.mxu0 0.0
        %1275 = vmatmul.mubr.f32.gmra.mrb[0].mxu0 %v1015
        %v1276 = vpop.f32.mrb[0].mxu0
        %v1277 = vadd.f32 %v1005, %v1276
        %v1278 = vpop.f32.mrb[0].mxu0
        %1279 = vmatprep.mubr.f32.mxu0 0.0
        %1280 = vmatmul.mubr.f32.gmra.mrb[0].mxu0 %v1018
        %v1281 = vpop.f32.mrb[0].mxu0
        %v1282 = vadd.f32 %v1005, %v1281
        %v1283 = vpop.f32.mrb[0].mxu0
        %1284 = vmatprep.mubr.f32.mxu0 0.0
        %1285 = vmatmul.mubr.f32.gmra.mrb[0].mxu0 %v1021
        %v1286 = vpop.f32.mrb[0].mxu0
        %v1287 = vadd.f32 %v1005, %v1286
        %v1288 = vpop.f32.mrb[0].mxu0
        %1289 = vmatprep.mubr.f32.mxu0 0.0
        %1290 = vmatmul.mubr.f32.gmra.mrb[0].mxu0 %v1024
        %v1291 = vpop.f32.mrb[0].mxu0
        %v1292 = vadd.f32 %v1005, %v1291
        %v1293 = vpop.f32.mrb[0].mxu0
        %1294 = vmatprep.mubr.f32.mxu0 0.0
        %1295 = vmatmul.mubr.f32.gmra.mrb[0].mxu0 %v1027
        %v1296 = vpop.f32.mrb[0].mxu0
        %v1297 = vadd.f32 %v1005, %v1296
        %v1298 = vpop.f32.mrb[0].mxu0
        %1299 = vmatprep.mubr.f32.mxu0 0.0
        %1300 = vmatmul.mubr.f32.gmra.mrb[0].mxu0 %v1030
        %v1301 = vpop.f32.mrb[0].mxu0
        %v1302 = vadd.f32 %v1005, %v1301
        %v1303 = vpop.f32.mrb[0].mxu0
        %1304 = vmatprep.mubr.f32.mxu0 0.0
        %1305 = vmatmul.mubr.f32.gmra.mrb[0].mxu0 %v1033
        %v1306 = vpop.f32.mrb[0].mxu0
        %v1307 = vadd.f32 %v1005, %v1306
        %v1308 = vpop.f32.mrb[0].mxu0
        %1309 = vmatprep.mubr.f32.mxu0 0.0
        %1310 = vmatmul.mubr.f32.gmra.mrb[0].mxu0 %v1036
        %v1311 = vpop.f32.mrb[0].mxu0
        %v1312 = vadd.f32 %v1005, %v1311
        %v1313 = vpop.f32.mrb[0].mxu0
        %1314 = vmatprep.mubr.f32.mxu0 0.0
        %1315 = vmatmul.mubr.f32.gmra.mrb[0].mxu0 %v1039
        %v1316 = vpop.f32.mrb[0].mxu0
        %v1317 = vadd.f32 %v1005, %v1316
        %v1318 = vpop.f32.mrb[0].mxu0
        %1319 = vmatprep.mubr.f32.mxu0 0.0
        %1320 = vmatmul.mubr.f32.gmra.mrb[0].mxu0 %v1042
        %v1321 = vpop.f32.mrb[0].mxu0
        %v1322 = vadd.f32 %v1005, %v1321
        %v1323 = vpop.f32.mrb[0].mxu0
        %1324 = vmatprep.mubr.f32.mxu0 0.0
        %1325 = vmatmul.mubr.f32.gmra.mrb[0].mxu0 %v1045
        %v1326 = vpop.f32.mrb[0].mxu0
        %v1327 = vadd.f32 %v1005, %v1326
        %v1328 = vpop.f32.mrb[0].mxu0
        %1329 = vmatprep.mubr.f32.mxu0 0.0
        %1330 = vmatmul.mubr.f32.gmra.mrb[0].mxu0 %v1048
        %v1331 = vpop.f32.mrb[0].mxu0
        %v1332 = vadd.f32 %v1005, %v1331
        %v1333 = vpop.f32.mrb[0].mxu0
        %1334 = vmatprep.mubr.f32.mxu0 0.0
        %1335 = vmatmul.mubr.f32.gmra.mrb[0].mxu0 %v1051
        %v1336 = vpop.f32.mrb[0].mxu0
        %v1337 = vadd.f32 %v1005, %v1336
        %v1338 = vpop.f32.mrb[0].mxu0
        %1339 = vmatprep.mubr.f32.mxu0 0.0
        %1340 = vmatmul.mubr.f32.gmra.mrb[0].mxu0 %v1054
        %v1341 = vpop.f32.mrb[0].mxu0
        %v1342 = vadd.f32 %v1005, %v1341
        %v1343 = vpop.f32.mrb[0].mxu0
        %1344 = vmatprep.mubr.f32.mxu0 0.0
        %1345 = vmatmul.mubr.f32.gmra.mrb[0].mxu0 %v1057
        %v1346 = vpop.f32.mrb[0].mxu0
        %v1347 = vadd.f32 %v1005, %v1346
        %v1348 = vpop.f32.mrb[0].mxu0
        %1349 = vmatprep.mubr.f32.mxu0 0.0
        %1350 = vmatmul.mubr.f32.gmra.mrb[0].mxu0 %v1060
        %v1351 = vpop.f32.mrb[0].mxu0
        %v1352 = vadd.f32 %v1005, %v1351
        %v1353 = vpop.f32.mrb[0].mxu0
        %1354 = vmatprep.mubr.f32.mxu0 0.0
        %1355 = vmatmul.mubr.f32.gmra.mrb[0].mxu0 %v1063
        %v1356 = vpop.f32.mrb[0].mxu0
        %v1357 = vadd.f32 %v1005, %v1356
        %v1358 = vpop.f32.mrb[0].mxu0
        %1359 = vmatprep.mubr.f32.mxu0 0.0
        %1360 = vmatmul.mubr.f32.gmra.mrb[0].mxu0 %v1066
        %v1361 = vpop.f32.mrb[0].mxu0
        %v1362 = vadd.f32 %v1005, %v1361
        %v1363 = vpop.f32.mrb[0].mxu0
        %1364 = vmatprep.mubr.f32.mxu0 0.0
        %1365 = vmatmul.mubr.f32.gmra.mrb[0].mxu0 %v1069
        %v1366 = vpop.f32.mrb[0].mxu0
        %v1367 = vadd.f32 %v1005, %v1366
        %v1368 = vpop.f32.mrb[0].mxu0
        %1369 = vmatprep.mubr.f32.mxu0 0.0
        %1370 = vmatmul.mubr.f32.gmra.mrb[0].mxu0 %v1072
        %v1371 = vpop.f32.mrb[0].mxu0
        %v1372 = vadd.f32 %v1005, %v1371
        %v1373 = vpop.f32.mrb[0].mxu0
        %1374 = vmatprep.mubr.f32.mxu0 0.0
        %1375 = vmatmul.mubr.f32.gmra.mrb[0].mxu0 %v1075
        %v1376 = vpop.f32.mrb[0].mxu0
        %v1377 = vadd.f32 %v1005, %v1376
        %v1378 = vpop.f32.mrb[0].mxu0
        %1379 = vmatprep.mubr.f32.mxu0 0.0
        %1380 = vmatmul.mubr.f32.gmra.mrb[0].mxu0 %v1078
        %v1381 = vpop.f32.mrb[0].mxu0
        %v1382 = vadd.f32 %v1005, %v1381
        %v1383 = vpop.f32.mrb[0].mxu0
        %1384 = vmatprep.mubr.f32.mxu0 0.0
        %1385 = vmatmul.mubr.f32.gmra.mrb[0].mxu0 %v1081
        %v1386 = vpop.f32.mrb[0].mxu0
        %v1387 = vadd.f32 %v1005, %v1386
        %v1388 = vpop.f32.mrb[0].mxu0
        %1389 = vmatprep.mubr.f32.mxu0 0.0
        %1390 = vmatmul.mubr.f32.gmra.mrb[0].mxu0 %v1084
        %v1391 = vpop.f32.mrb[0].mxu0
        %v1392 = vadd.f32 %v1005, %v1391
        %v1393 = vpop.f32.mrb[0].mxu0
        %1394 = vmatprep.mubr.f32.mxu0 0.0
        %1395 = vmatmul.mubr.f32.gmra.mrb[0].mxu0 %v1087
        %v1396 = vpop.f32.mrb[0].mxu0
        %v1397 = vadd.f32 %v1005, %v1396
        %v1398 = vpop.f32.mrb[0].mxu0
        %1399 = vmatprep.mubr.f32.mxu0 0.0
        %1400 = vmatmul.mubr.f32.gmra.mrb[0].mxu0 %v1090
        %v1401 = vpop.f32.mrb[0].mxu0
        %v1402 = vadd.f32 %v1005, %v1401
        %v1403 = vpop.f32.mrb[0].mxu0
        %1404 = vmatprep.mubr.f32.mxu0 0.0
        %1405 = vmatmul.mubr.f32.gmra.mrb[0].mxu0 %v1093
        %v1406 = vpop.f32.mrb[0].mxu0
        %v1407 = vadd.f32 %v1005, %v1406
        %v1408 = vpop.f32.mrb[0].mxu0
        %1409 = vmatprep.mubr.f32.mxu0 0.0
        %1410 = vmatmul.mubr.f32.gmra.mrb[0].mxu0 %v1096
        %v1411 = vpop.f32.mrb[0].mxu0
        %v1412 = vadd.f32 %v1005, %v1411
        %v1413 = vpop.f32.mrb[0].mxu0
        %1414 = vmatprep.mubr.f32.mxu0 0.0
        %1415 = vmatmul.mubr.f32.gmra.mrb[0].mxu0 %v1099
        %v1416 = vpop.f32.mrb[0].mxu0
        %v1417 = vadd.f32 %v1005, %v1416
        %v1418 = vpop.f32.mrb[0].mxu0
        %1419 = vmatprep.mubr.f32.mxu0 0.0
        %1420 = vmatmul.mubr.f32.gmra.mrb[0].mxu0 %v1102
        %v1421 = vpop.f32.mrb[0].mxu0
        %v1422 = vadd.f32 %v1005, %v1421
        %v1423 = vpop.f32.mrb[0].mxu0
        %1424 = vmatprep.mubr.f32.mxu0 0.0
        %1425 = vmatmul.mubr.f32.gmra.mrb[0].mxu0 %v1105
        %v1426 = vpop.f32.mrb[0].mxu0
        %v1427 = vadd.f32 %v1005, %v1426
        %v1428 = vpop.f32.mrb[0].mxu0
        %1429 = vmatprep.mubr.f32.mxu0 0.0
        %1430 = vmatmul.mubr.f32.gmra.mrb[0].mxu0 %v1108
        %v1431 = vpop.f32.mrb[0].mxu0
        %v1432 = vadd.f32 %v1005, %v1431
        %v1433 = vpop.f32.mrb[0].mxu0
        %1434 = vmatprep.mubr.f32.mxu0 0.0
        %1435 = vmatmul.mubr.f32.gmra.mrb[0].mxu0 %v1111
        %v1436 = vpop.f32.mrb[0].mxu0
        %v1437 = vadd.f32 %v1005, %v1436
        %v1438 = vpop.f32.mrb[0].mxu0
        %1439 = vmatprep.mubr.f32.mxu0 0.0
        %1440 = vmatmul.mubr.f32.gmra.mrb[0].mxu0 %v1114
        %v1441 = vpop.f32.mrb[0].mxu0
        %v1442 = vadd.f32 %v1005, %v1441
        %v1443 = vpop.f32.mrb[0].mxu0
        %1444 = vmatprep.mubr.f32.mxu0 0.0
        %1445 = vmatmul.mubr.f32.gmra.mrb[0].mxu0 %v1117
        %v1446 = vpop.f32.mrb[0].mxu0
        %v1447 = vadd.f32 %v1005, %v1446
        %v1448 = vpop.f32.mrb[0].mxu0
        %1449 = vmatprep.mubr.f32.mxu0 0.0
        %1450 = vmatmul.mubr.f32.gmra.mrb[0].mxu0 %v1120
        %v1451 = vpop.f32.mrb[0].mxu0
        %v1452 = vadd.f32 %v1005, %v1451
        %v1453 = vpop.f32.mrb[0].mxu0
        %1454 = vmatprep.mubr.f32.mxu0 0.0
        %1455 = vmatmul.mubr.f32.gmra.mrb[0].mxu0 %v1123
        %v1456 = vpop.f32.mrb[0].mxu0
        %v1457 = vadd.f32 %v1005, %v1456
        %v1458 = vpop.f32.mrb[0].mxu0
        %1459 = vmatprep.mubr.f32.mxu0 0.0
        %1460 = vmatmul.mubr.f32.gmra.mrb[0].mxu0 %v1126
        %v1461 = vpop.f32.mrb[0].mxu0
        %v1462 = vadd.f32 %v1005, %v1461
        %v1463 = vpop.f32.mrb[0].mxu0
        %1464 = vmatprep.mubr.f32.mxu0 0.0
        %1465 = vmatmul.mubr.f32.gmra.mrb[0].mxu0 %v1129
        %v1466 = vpop.f32.mrb[0].mxu0
        %v1467 = vadd.f32 %v1005, %v1466
        %v1468 = vpop.f32.mrb[0].mxu0
        %1469 = vmatprep.mubr.f32.mxu0 0.0
        %1470 = vmatmul.mubr.f32.gmra.mrb[0].mxu0 %v1132
        %v1471 = vpop.f32.mrb[0].mxu0
        %v1472 = vadd.f32 %v1005, %v1471
        %v1473 = vpop.f32.mrb[0].mxu0
        %1474 = vmatprep.mubr.f32.mxu0 0.0
        %1475 = vmatmul.mubr.f32.gmra.mrb[0].mxu0 %v1135
        %v1476 = vpop.f32.mrb[0].mxu0
        %v1477 = vadd.f32 %v1005, %v1476
        %v1478 = vpop.f32.mrb[0].mxu0
        %1479 = vmatprep.mubr.f32.mxu0 0.0
        %1480 = vmatmul.mubr.f32.gmra.mrb[0].mxu0 %v1138
        %v1481 = vpop.f32.mrb[0].mxu0
        %v1482 = vadd.f32 %v1005, %v1481
        %v1483 = vpop.f32.mrb[0].mxu0
        %1484 = vmatprep.mubr.f32.mxu0 0.0
        %1485 = vmatmul.mubr.f32.gmra.mrb[0].mxu0 %v1141
        %v1486 = vpop.f32.mrb[0].mxu0
        %v1487 = vadd.f32 %v1005, %v1486
        %v1488 = vpop.f32.mrb[0].mxu0
        %1489 = vmatprep.mubr.f32.mxu0 0.0
        %1490 = vmatmul.mubr.f32.gmra.mrb[0].mxu0 %v1144
        %v1491 = vpop.f32.mrb[0].mxu0
        %v1492 = vadd.f32 %v1005, %v1491
        %v1493 = vpop.f32.mrb[0].mxu0
        %1494 = vmatprep.mubr.f32.mxu0 0.0
        %1495 = vmatmul.mubr.f32.gmra.mrb[0].mxu0 %v1147
        %v1496 = vpop.f32.mrb[0].mxu0
        %v1497 = vadd.f32 %v1005, %v1496
        %v1498 = vpop.f32.mrb[0].mxu0
        %1499 = vmatprep.mubr.f32.mxu0 0.0
        %1500 = vmatmul.mubr.f32.gmra.mrb[0].mxu0 %v1150
        %v1501 = vpop.f32.mrb[0].mxu0
        %v1502 = vadd.f32 %v1005, %v1501
        %v1503 = vpop.f32.mrb[0].mxu0
        %1504 = vmatprep.mubr.f32.mxu0 0.0
        %1505 = vmatmul.mubr.f32.gmra.mrb[0].mxu0 %v1153
        %v1506 = vpop.f32.mrb[0].mxu0
        %v1507 = vadd.f32 %v1005, %v1506
        %v1508 = vpop.f32.mrb[0].mxu0
        %1509 = vmatprep.mubr.f32.mxu0 0.0
        %1510 = vmatmul.mubr.f32.gmra.mrb[0].mxu0 %v1156
        %v1511 = vpop.f32.mrb[0].mxu0
        %v1512 = vadd.f32 %v1005, %v1511
        %v1513 = vpop.f32.mrb[0].mxu0
        %1514 = vmatprep.mubr.f32.mxu0 0.0
        %1515 = vmatmul.mubr.f32.gmra.mrb[0].mxu0 %v1159
        %v1516 = vpop.f32.mrb[0].mxu0
        %v1517 = vadd.f32 %v1005, %v1516
        %v1518 = vpop.f32.mrb[0].mxu0
        %1519 = vmatprep.mubr.f32.mxu0 0.0
        %1520 = vmatmul.mubr.f32.gmra.mrb[0].mxu0 %v1162
        %v1521 = vpop.f32.mrb[0].mxu0
        %v1522 = vadd.f32 %v1005, %v1521
        %v1523 = vpop.f32.mrb[0].mxu0
        %1524 = vmatprep.mubr.f32.mxu0 0.0
        %1525 = vmatmul.mubr.f32.gmra.mrb[0].mxu0 %v1165
        %v1526 = vpop.f32.mrb[0].mxu0
        %v1527 = vadd.f32 %v1005, %v1526
        %v1528 = vpop.f32.mrb[0].mxu0
        %1529 = vmatprep.mubr.f32.mxu0 0.0
        %1530 = vmatmul.mubr.f32.gmra.mrb[0].mxu0 %v1168
        %v1531 = vpop.f32.mrb[0].mxu0
        %v1532 = vadd.f32 %v1005, %v1531
        %v1533 = vpop.f32.mrb[0].mxu0
        %1534 = vmatprep.mubr.f32.mxu0 0.0
        %1535 = vmatmul.mubr.f32.gmra.mrb[0].mxu0 %v1171
        %v1536 = vpop.f32.mrb[0].mxu0
        %v1537 = vadd.f32 %v1005, %v1536
        %v1538 = vpop.f32.mrb[0].mxu0
        %1539 = vmatprep.mubr.f32.mxu0 0.0
        %1540 = vmatmul.mubr.f32.gmra.mrb[0].mxu0 %v1174
        %v1541 = vpop.f32.mrb[0].mxu0
        %v1542 = vadd.f32 %v1005, %v1541
        %v1543 = vpop.f32.mrb[0].mxu0
        %1544 = vmatprep.mubr.f32.mxu0 0.0
        %1545 = vmatmul.mubr.f32.gmra.mrb[0].mxu0 %v1177
        %v1546 = vpop.f32.mrb[0].mxu0
        %v1547 = vadd.f32 %v1005, %v1546
        %v1548 = vpop.f32.mrb[0].mxu0
        %1549 = vmatprep.mubr.f32.mxu0 0.0
        %1550 = vmatmul.mubr.f32.gmra.mrb[0].mxu0 %v1180
        %v1551 = vpop.f32.mrb[0].mxu0
        %v1552 = vadd.f32 %v1005, %v1551
        %v1553 = vpop.f32.mrb[0].mxu0
        %1554 = vmatprep.mubr.f32.mxu0 0.0
        %1555 = vmatmul.mubr.f32.gmra.mrb[0].mxu0 %v1183
        %v1556 = vpop.f32.mrb[0].mxu0
        %v1557 = vadd.f32 %v1005, %v1556
        %v1558 = vpop.f32.mrb[0].mxu0
        %1559 = vmatprep.mubr.f32.mxu0 0.0
        %1560 = vmatmul.mubr.f32.gmra.mrb[0].mxu0 %v1186
        %v1561 = vpop.f32.mrb[0].mxu0
        %v1562 = vadd.f32 %v1005, %v1561
        %v1563 = vpop.f32.mrb[0].mxu0
        %1564 = vmatprep.mubr.f32.mxu0 0.0
        %1565 = vmatmul.mubr.f32.gmra.mrb[0].mxu0 %v1189
        %v1566 = vpop.f32.mrb[0].mxu0
        %v1567 = vadd.f32 %v1005, %v1566
        %v1568 = vpop.f32.mrb[0].mxu0
        %1569 = vmatprep.mubr.f32.mxu0 0.0
        %1570 = vmatmul.mubr.f32.gmra.mrb[0].mxu0 %v1192
        %v1571 = vpop.f32.mrb[0].mxu0
        %v1572 = vadd.f32 %v1005, %v1571
        %v1573 = vpop.f32.mrb[0].mxu0
        %1574 = vmatprep.mubr.f32.mxu0 0.0
        %1575 = vmatmul.mubr.f32.gmra.mrb[0].mxu0 %v1195
        %v1576 = vpop.f32.mrb[0].mxu0
        %v1577 = vadd.f32 %v1005, %v1576
        %v1578 = vpop.f32.mrb[0].mxu0
        %1579 = vmatprep.mubr.f32.mxu0 0.0
        %1580 = vmatmul.mubr.f32.gmra.mrb[0].mxu0 %v1198
        %v1581 = vpop.f32.mrb[0].mxu0
        %v1582 = vadd.f32 %v1005, %v1581
        %v1583 = vpop.f32.mrb[0].mxu0
        %1584 = vdwg.mxu0
        %v1585 = vmax.f32 %v1267, 0.0
        %v1586 = vmax.f32 %v1272, 0.0
        %v1587 = vmax.f32 %v1277, 0.0
        %v1588 = vmax.f32 %v1282, 0.0
        %v1589 = vmax.f32 %v1287, 0.0
        %v1590 = vmax.f32 %v1292, 0.0
        %v1591 = vmax.f32 %v1297, 0.0
        %v1592 = vmax.f32 %v1302, 0.0
        %v1593 = vmax.f32 %v1307, 0.0
        %v1594 = vmax.f32 %v1312, 0.0
        %v1595 = vmax.f32 %v1317, 0.0
        %v1596 = vmax.f32 %v1322, 0.0
        %v1597 = vmax.f32 %v1327, 0.0
        %v1598 = vmax.f32 %v1332, 0.0
        %v1599 = vmax.f32 %v1337, 0.0
        %v1600 = vmax.f32 %v1342, 0.0
        %v1601 = vmax.f32 %v1347, 0.0
        %v1602 = vmax.f32 %v1352, 0.0
        %v1603 = vmax.f32 %v1357, 0.0
        %v1604 = vmax.f32 %v1362, 0.0
        %v1605 = vmax.f32 %v1367, 0.0
        %v1606 = vmax.f32 %v1372, 0.0
        %v1607 = vmax.f32 %v1377, 0.0
        %v1608 = vmax.f32 %v1382, 0.0
        %v1609 = vmax.f32 %v1387, 0.0
        %v1610 = vmax.f32 %v1392, 0.0
        %v1611 = vmax.f32 %v1397, 0.0
        %v1612 = vmax.f32 %v1402, 0.0
        %v1613 = vmax.f32 %v1407, 0.0
        %v1614 = vmax.f32 %v1412, 0.0
        %v1615 = vmax.f32 %v1417, 0.0
        %v1616 = vmax.f32 %v1422, 0.0
        %v1617 = vmax.f32 %v1427, 0.0
        %v1618 = vmax.f32 %v1432, 0.0
        %v1619 = vmax.f32 %v1437, 0.0
        %v1620 = vmax.f32 %v1442, 0.0
        %v1621 = vmax.f32 %v1447, 0.0
        %v1622 = vmax.f32 %v1452, 0.0
        %v1623 = vmax.f32 %v1457, 0.0
        %v1624 = vmax.f32 %v1462, 0.0
        %v1625 = vmax.f32 %v1467, 0.0
        %v1626 = vmax.f32 %v1472, 0.0
        %v1627 = vmax.f32 %v1477, 0.0
        %v1628 = vmax.f32 %v1482, 0.0
        %v1629 = vmax.f32 %v1487, 0.0
        %v1630 = vmax.f32 %v1492, 0.0
        %v1631 = vmax.f32 %v1497, 0.0
        %v1632 = vmax.f32 %v1502, 0.0
        %v1633 = vmax.f32 %v1507, 0.0
        %v1634 = vmax.f32 %v1512, 0.0
        %v1635 = vmax.f32 %v1517, 0.0
        %v1636 = vmax.f32 %v1522, 0.0
        %v1637 = vmax.f32 %v1527, 0.0
        %v1638 = vmax.f32 %v1532, 0.0
        %v1639 = vmax.f32 %v1537, 0.0
        %v1640 = vmax.f32 %v1542, 0.0
        %v1641 = vmax.f32 %v1547, 0.0
        %v1642 = vmax.f32 %v1552, 0.0
        %v1643 = vmax.f32 %v1557, 0.0
        %v1644 = vmax.f32 %v1562, 0.0
        %v1645 = vmax.f32 %v1567, 0.0
        %v1646 = vmax.f32 %v1572, 0.0
        %v1647 = vmax.f32 %v1577, 0.0
        %v1648 = vmax.f32 %v1582, 0.0
        %v1649 = vld [vmem:[%s5] sm:$0xff]
        %v1650 = vld [vmem:[%s5 + $0x8] sm:$0xff]
        %v1651 = vld [vmem:[%s5 + $0x10] sm:$0xff]
        %v1652 = vld [vmem:[%s5 + $0x18] sm:$0xff]
        %v1654 = vlaneseq
        %v1655 = vshrl.u32 %v1654, 7
        %v1656 = vsub.s32 0, %v1655
        %v1657 = vrot.slane %v346, %v1656
        %v1660 = vsel %vm1007, %v1585, 0
        %v1663 = vsel %vm1007, %v1586, 0
        %v1666 = vsel %vm1007, %v1587, 0
        %v1669 = vsel %vm1007, %v1588, 0
        %v1672 = vsel %vm1007, %v1589, 0
        %v1675 = vsel %vm1007, %v1590, 0
        %v1678 = vsel %vm1007, %v1591, 0
        %v1681 = vsel %vm1007, %v1592, 0
        %v1684 = vsel %vm1007, %v1593, 0
        %v1687 = vsel %vm1007, %v1594, 0
        %v1690 = vsel %vm1007, %v1595, 0
        %v1693 = vsel %vm1007, %v1596, 0
        %v1696 = vsel %vm1007, %v1597, 0
        %v1699 = vsel %vm1007, %v1598, 0
        %v1702 = vsel %vm1007, %v1599, 0
        %v1705 = vsel %vm1007, %v1600, 0
        %v1708 = vsel %vm1007, %v1601, 0
        %v1711 = vsel %vm1007, %v1602, 0
        %v1714 = vsel %vm1007, %v1603, 0
        %v1717 = vsel %vm1007, %v1604, 0
        %v1720 = vsel %vm1007, %v1605, 0
        %v1723 = vsel %vm1007, %v1606, 0
        %v1726 = vsel %vm1007, %v1607, 0
        %v1729 = vsel %vm1007, %v1608, 0
        %v1732 = vsel %vm1007, %v1609, 0
        %v1735 = vsel %vm1007, %v1610, 0
        %v1738 = vsel %vm1007, %v1611, 0
        %v1741 = vsel %vm1007, %v1612, 0
        %v1744 = vsel %vm1007, %v1613, 0
        %v1747 = vsel %vm1007, %v1614, 0
        %v1750 = vsel %vm1007, %v1615, 0
        %v1753 = vsel %vm1007, %v1616, 0
        %v1756 = vsel %vm1007, %v1617, 0
        %v1759 = vsel %vm1007, %v1618, 0
        %v1762 = vsel %vm1007, %v1619, 0
        %v1765 = vsel %vm1007, %v1620, 0
        %v1768 = vsel %vm1007, %v1621, 0
        %v1771 = vsel %vm1007, %v1622, 0
        %v1774 = vsel %vm1007, %v1623, 0
        %v1777 = vsel %vm1007, %v1624, 0
        %v1780 = vsel %vm1007, %v1625, 0
        %v1783 = vsel %vm1007, %v1626, 0
        %v1786 = vsel %vm1007, %v1627, 0
        %v1789 = vsel %vm1007, %v1628, 0
        %v1792 = vsel %vm1007, %v1629, 0
        %v1795 = vsel %vm1007, %v1630, 0
        %v1798 = vsel %vm1007, %v1631, 0
        %v1801 = vsel %vm1007, %v1632, 0
        %v1804 = vsel %vm1007, %v1633, 0
        %v1807 = vsel %vm1007, %v1634, 0
        %v1810 = vsel %vm1007, %v1635, 0
        %v1813 = vsel %vm1007, %v1636, 0
        %v1816 = vsel %vm1007, %v1637, 0
        %v1819 = vsel %vm1007, %v1638, 0
        %v1822 = vsel %vm1007, %v1639, 0
        %v1825 = vsel %vm1007, %v1640, 0
        %v1828 = vsel %vm1007, %v1641, 0
        %v1831 = vsel %vm1007, %v1642, 0
        %v1834 = vsel %vm1007, %v1643, 0
        %v1837 = vsel %vm1007, %v1644, 0
        %v1840 = vsel %vm1007, %v1645, 0
        %v1843 = vsel %vm1007, %v1646, 0
        %v1846 = vsel %vm1007, %v1647, 0
        %v1849 = vsel %vm1007, %v1648, 0
        %1851 = vmatprep.subr.mxu0 0.0
        %1852 = vmatpush1.msra.mxu0 %v1649
        %1853 = vmatprep.subr.mxu0 0.0
        %1854 = vmatpush1.msra.mxu0 %v1650
        %1855 = vmatprep.subr.mxu0 0.0
        %1856 = vmatpush1.msra.mxu0 %v1651
        %1857 = vmatprep.subr.mxu0 0.0
        %1858 = vmatpush1.msra.mxu0 %v1652
        %1859 = vmatprep.subr.mxu0 0.0
        %1860 = vmatpush1.msra.mxu0 0.0
        %1861 = vmatprep.subr.mxu0 0.0
        %1862 = vmatpush1.msra.mxu0 0.0
        %1863 = vmatprep.subr.mxu0 0.0
        %1864 = vmatpush1.msra.mxu0 0.0
        %1865 = vmatprep.subr.mxu0 0.0
        %1866 = vmatpush1.msra.mxu0 0.0
        %1867 = vmatprep.subr.mxu0 0.0
        %1868 = vmatpush1.msra.mxu0 0.0
        %1869 = vmatprep.subr.mxu0 0.0
        %1870 = vmatpush1.msra.mxu0 0.0
        %1871 = vmatprep.subr.mxu0 0.0
        %1872 = vmatpush1.msra.mxu0 0.0
        %1873 = vmatprep.subr.mxu0 0.0
        %1874 = vmatpush1.msra.mxu0 0.0
        %1875 = vmatprep.subr.mxu0 0.0
        %1876 = vmatpush1.msra.mxu0 0.0
        %1877 = vmatprep.subr.mxu0 0.0
        %1878 = vmatpush1.msra.mxu0 0.0
        %1879 = vmatprep.subr.mxu0 0.0
        %1880 = vmatpush1.msra.mxu0 0.0
        %1881 = vmatprep.subr.mxu0 0.0
        %1882 = vmatpush1.msra.mxu0 0.0
        %1883 = vmatprep.subr.mxu0 0.0
        %1884 = vmatpush1.msra.mxu0 0.0
        %1885 = vmatprep.subr.mxu0 0.0
        %1886 = vmatpush1.msra.mxu0 0.0
        %1887 = vmatprep.subr.mxu0 0.0
        %1888 = vmatpush1.msra.mxu0 0.0
        %1889 = vmatprep.subr.mxu0 0.0
        %1890 = vmatpush1.msra.mxu0 0.0
        %1891 = vmatprep.subr.mxu0 0.0
        %1892 = vmatpush1.msra.mxu0 0.0
        %1893 = vmatprep.subr.mxu0 0.0
        %1894 = vmatpush1.msra.mxu0 0.0
        %1895 = vmatprep.subr.mxu0 0.0
        %1896 = vmatpush1.msra.mxu0 0.0
        %1897 = vmatprep.subr.mxu0 0.0
        %1898 = vmatpush1.msra.mxu0 0.0
        %1899 = vmatprep.subr.mxu0 0.0
        %1900 = vmatpush1.msra.mxu0 0.0
        %1901 = vmatprep.subr.mxu0 0.0
        %1902 = vmatpush1.msra.mxu0 0.0
        %1903 = vmatprep.subr.mxu0 0.0
        %1904 = vmatpush1.msra.mxu0 0.0
        %1905 = vmatprep.subr.mxu0 0.0
        %1906 = vmatpush1.msra.mxu0 0.0
        %1907 = vmatprep.subr.mxu0 0.0
        %1908 = vmatpush1.msra.mxu0 0.0
        %1909 = vmatprep.subr.mxu0 0.0
        %1910 = vmatpush1.msra.mxu0 0.0
        %1911 = vmatprep.subr.mxu0 0.0
        %1912 = vmatpush1.msra.mxu0 0.0
        %1913 = vmatprep.subr.mxu0 0.0
        %1914 = vmatpush1.msra.mxu0 0.0
        %1915 = vmatprep.mubr.f32.mxu0 0.0
        %1916 = vmatmul.mubr.f32.gmra.mrb[0].mxu0 %v1660
        %v1917 = vpop.f32.mrb[0].mxu0
        %v1918 = vadd.f32 %v1657, %v1917
        %v1919 = vpop.f32.mrb[0].mxu0
        %1920 = vmatprep.mubr.f32.mxu0 0.0
        %1921 = vmatmul.mubr.f32.gmra.mrb[0].mxu0 %v1663
        %v1922 = vpop.f32.mrb[0].mxu0
        %v1923 = vadd.f32 %v1657, %v1922
        %v1924 = vpop.f32.mrb[0].mxu0
        %1925 = vmatprep.mubr.f32.mxu0 0.0
        %1926 = vmatmul.mubr.f32.gmra.mrb[0].mxu0 %v1666
        %v1927 = vpop.f32.mrb[0].mxu0
        %v1928 = vadd.f32 %v1657, %v1927
        %v1929 = vpop.f32.mrb[0].mxu0
        %1930 = vmatprep.mubr.f32.mxu0 0.0
        %1931 = vmatmul.mubr.f32.gmra.mrb[0].mxu0 %v1669
        %v1932 = vpop.f32.mrb[0].mxu0
        %v1933 = vadd.f32 %v1657, %v1932
        %v1934 = vpop.f32.mrb[0].mxu0
        %1935 = vmatprep.mubr.f32.mxu0 0.0
        %1936 = vmatmul.mubr.f32.gmra.mrb[0].mxu0 %v1672
        %v1937 = vpop.f32.mrb[0].mxu0
        %v1938 = vadd.f32 %v1657, %v1937
        %v1939 = vpop.f32.mrb[0].mxu0
        %1940 = vmatprep.mubr.f32.mxu0 0.0
        %1941 = vmatmul.mubr.f32.gmra.mrb[0].mxu0 %v1675
        %v1942 = vpop.f32.mrb[0].mxu0
        %v1943 = vadd.f32 %v1657, %v1942
        %v1944 = vpop.f32.mrb[0].mxu0
        %1945 = vmatprep.mubr.f32.mxu0 0.0
        %1946 = vmatmul.mubr.f32.gmra.mrb[0].mxu0 %v1678
        %v1947 = vpop.f32.mrb[0].mxu0
        %v1948 = vadd.f32 %v1657, %v1947
        %v1949 = vpop.f32.mrb[0].mxu0
        %1950 = vmatprep.mubr.f32.mxu0 0.0
        %1951 = vmatmul.mubr.f32.gmra.mrb[0].mxu0 %v1681
        %v1952 = vpop.f32.mrb[0].mxu0
        %v1953 = vadd.f32 %v1657, %v1952
        %v1954 = vpop.f32.mrb[0].mxu0
        %1955 = vmatprep.mubr.f32.mxu0 0.0
        %1956 = vmatmul.mubr.f32.gmra.mrb[0].mxu0 %v1684
        %v1957 = vpop.f32.mrb[0].mxu0
        %v1958 = vadd.f32 %v1657, %v1957
        %v1959 = vpop.f32.mrb[0].mxu0
        %1960 = vmatprep.mubr.f32.mxu0 0.0
        %1961 = vmatmul.mubr.f32.gmra.mrb[0].mxu0 %v1687
        %v1962 = vpop.f32.mrb[0].mxu0
        %v1963 = vadd.f32 %v1657, %v1962
        %v1964 = vpop.f32.mrb[0].mxu0
        %1965 = vmatprep.mubr.f32.mxu0 0.0
        %1966 = vmatmul.mubr.f32.gmra.mrb[0].mxu0 %v1690
        %v1967 = vpop.f32.mrb[0].mxu0
        %v1968 = vadd.f32 %v1657, %v1967
        %v1969 = vpop.f32.mrb[0].mxu0
        %1970 = vmatprep.mubr.f32.mxu0 0.0
        %1971 = vmatmul.mubr.f32.gmra.mrb[0].mxu0 %v1693
        %v1972 = vpop.f32.mrb[0].mxu0
        %v1973 = vadd.f32 %v1657, %v1972
        %v1974 = vpop.f32.mrb[0].mxu0
        %1975 = vmatprep.mubr.f32.mxu0 0.0
        %1976 = vmatmul.mubr.f32.gmra.mrb[0].mxu0 %v1696
        %v1977 = vpop.f32.mrb[0].mxu0
        %v1978 = vadd.f32 %v1657, %v1977
        %v1979 = vpop.f32.mrb[0].mxu0
        %1980 = vmatprep.mubr.f32.mxu0 0.0
        %1981 = vmatmul.mubr.f32.gmra.mrb[0].mxu0 %v1699
        %v1982 = vpop.f32.mrb[0].mxu0
        %v1983 = vadd.f32 %v1657, %v1982
        %v1984 = vpop.f32.mrb[0].mxu0
        %1985 = vmatprep.mubr.f32.mxu0 0.0
        %1986 = vmatmul.mubr.f32.gmra.mrb[0].mxu0 %v1702
        %v1987 = vpop.f32.mrb[0].mxu0
        %v1988 = vadd.f32 %v1657, %v1987
        %v1989 = vpop.f32.mrb[0].mxu0
        %1990 = vmatprep.mubr.f32.mxu0 0.0
        %1991 = vmatmul.mubr.f32.gmra.mrb[0].mxu0 %v1705
        %v1992 = vpop.f32.mrb[0].mxu0
        %v1993 = vadd.f32 %v1657, %v1992
        %v1994 = vpop.f32.mrb[0].mxu0
        %1995 = vmatprep.mubr.f32.mxu0 0.0
        %1996 = vmatmul.mubr.f32.gmra.mrb[0].mxu0 %v1708
        %v1997 = vpop.f32.mrb[0].mxu0
        %v1998 = vadd.f32 %v1657, %v1997
        %v1999 = vpop.f32.mrb[0].mxu0
        %2000 = vmatprep.mubr.f32.mxu0 0.0
        %2001 = vmatmul.mubr.f32.gmra.mrb[0].mxu0 %v1711
        %v2002 = vpop.f32.mrb[0].mxu0
        %v2003 = vadd.f32 %v1657, %v2002
        %v2004 = vpop.f32.mrb[0].mxu0
        %2005 = vmatprep.mubr.f32.mxu0 0.0
        %2006 = vmatmul.mubr.f32.gmra.mrb[0].mxu0 %v1714
        %v2007 = vpop.f32.mrb[0].mxu0
        %v2008 = vadd.f32 %v1657, %v2007
        %v2009 = vpop.f32.mrb[0].mxu0
        %2010 = vmatprep.mubr.f32.mxu0 0.0
        %2011 = vmatmul.mubr.f32.gmra.mrb[0].mxu0 %v1717
        %v2012 = vpop.f32.mrb[0].mxu0
        %v2013 = vadd.f32 %v1657, %v2012
        %v2014 = vpop.f32.mrb[0].mxu0
        %2015 = vmatprep.mubr.f32.mxu0 0.0
        %2016 = vmatmul.mubr.f32.gmra.mrb[0].mxu0 %v1720
        %v2017 = vpop.f32.mrb[0].mxu0
        %v2018 = vadd.f32 %v1657, %v2017
        %v2019 = vpop.f32.mrb[0].mxu0
        %2020 = vmatprep.mubr.f32.mxu0 0.0
        %2021 = vmatmul.mubr.f32.gmra.mrb[0].mxu0 %v1723
        %v2022 = vpop.f32.mrb[0].mxu0
        %v2023 = vadd.f32 %v1657, %v2022
        %v2024 = vpop.f32.mrb[0].mxu0
        %2025 = vmatprep.mubr.f32.mxu0 0.0
        %2026 = vmatmul.mubr.f32.gmra.mrb[0].mxu0 %v1726
        %v2027 = vpop.f32.mrb[0].mxu0
        %v2028 = vadd.f32 %v1657, %v2027
        %v2029 = vpop.f32.mrb[0].mxu0
        %2030 = vmatprep.mubr.f32.mxu0 0.0
        %2031 = vmatmul.mubr.f32.gmra.mrb[0].mxu0 %v1729
        %v2032 = vpop.f32.mrb[0].mxu0
        %v2033 = vadd.f32 %v1657, %v2032
        %v2034 = vpop.f32.mrb[0].mxu0
        %2035 = vmatprep.mubr.f32.mxu0 0.0
        %2036 = vmatmul.mubr.f32.gmra.mrb[0].mxu0 %v1732
        %v2037 = vpop.f32.mrb[0].mxu0
        %v2038 = vadd.f32 %v1657, %v2037
        %v2039 = vpop.f32.mrb[0].mxu0
        %2040 = vmatprep.mubr.f32.mxu0 0.0
        %2041 = vmatmul.mubr.f32.gmra.mrb[0].mxu0 %v1735
        %v2042 = vpop.f32.mrb[0].mxu0
        %v2043 = vadd.f32 %v1657, %v2042
        %v2044 = vpop.f32.mrb[0].mxu0
        %2045 = vmatprep.mubr.f32.mxu0 0.0
        %2046 = vmatmul.mubr.f32.gmra.mrb[0].mxu0 %v1738
        %v2047 = vpop.f32.mrb[0].mxu0
        %v2048 = vadd.f32 %v1657, %v2047
        %v2049 = vpop.f32.mrb[0].mxu0
        %2050 = vmatprep.mubr.f32.mxu0 0.0
        %2051 = vmatmul.mubr.f32.gmra.mrb[0].mxu0 %v1741
        %v2052 = vpop.f32.mrb[0].mxu0
        %v2053 = vadd.f32 %v1657, %v2052
        %v2054 = vpop.f32.mrb[0].mxu0
        %2055 = vmatprep.mubr.f32.mxu0 0.0
        %2056 = vmatmul.mubr.f32.gmra.mrb[0].mxu0 %v1744
        %v2057 = vpop.f32.mrb[0].mxu0
        %v2058 = vadd.f32 %v1657, %v2057
        %v2059 = vpop.f32.mrb[0].mxu0
        %2060 = vmatprep.mubr.f32.mxu0 0.0
        %2061 = vmatmul.mubr.f32.gmra.mrb[0].mxu0 %v1747
        %v2062 = vpop.f32.mrb[0].mxu0
        %v2063 = vadd.f32 %v1657, %v2062
        %v2064 = vpop.f32.mrb[0].mxu0
        %2065 = vmatprep.mubr.f32.mxu0 0.0
        %2066 = vmatmul.mubr.f32.gmra.mrb[0].mxu0 %v1750
        %v2067 = vpop.f32.mrb[0].mxu0
        %v2068 = vadd.f32 %v1657, %v2067
        %v2069 = vpop.f32.mrb[0].mxu0
        %2070 = vmatprep.mubr.f32.mxu0 0.0
        %2071 = vmatmul.mubr.f32.gmra.mrb[0].mxu0 %v1753
        %v2072 = vpop.f32.mrb[0].mxu0
        %v2073 = vadd.f32 %v1657, %v2072
        %v2074 = vpop.f32.mrb[0].mxu0
        %2075 = vmatprep.mubr.f32.mxu0 0.0
        %2076 = vmatmul.mubr.f32.gmra.mrb[0].mxu0 %v1756
        %v2077 = vpop.f32.mrb[0].mxu0
        %v2078 = vadd.f32 %v1657, %v2077
        %v2079 = vpop.f32.mrb[0].mxu0
        %2080 = vmatprep.mubr.f32.mxu0 0.0
        %2081 = vmatmul.mubr.f32.gmra.mrb[0].mxu0 %v1759
        %v2082 = vpop.f32.mrb[0].mxu0
        %v2083 = vadd.f32 %v1657, %v2082
        %v2084 = vpop.f32.mrb[0].mxu0
        %2085 = vmatprep.mubr.f32.mxu0 0.0
        %2086 = vmatmul.mubr.f32.gmra.mrb[0].mxu0 %v1762
        %v2087 = vpop.f32.mrb[0].mxu0
        %v2088 = vadd.f32 %v1657, %v2087
        %v2089 = vpop.f32.mrb[0].mxu0
        %2090 = vmatprep.mubr.f32.mxu0 0.0
        %2091 = vmatmul.mubr.f32.gmra.mrb[0].mxu0 %v1765
        %v2092 = vpop.f32.mrb[0].mxu0
        %v2093 = vadd.f32 %v1657, %v2092
        %v2094 = vpop.f32.mrb[0].mxu0
        %2095 = vmatprep.mubr.f32.mxu0 0.0
        %2096 = vmatmul.mubr.f32.gmra.mrb[0].mxu0 %v1768
        %v2097 = vpop.f32.mrb[0].mxu0
        %v2098 = vadd.f32 %v1657, %v2097
        %v2099 = vpop.f32.mrb[0].mxu0
        %2100 = vmatprep.mubr.f32.mxu0 0.0
        %2101 = vmatmul.mubr.f32.gmra.mrb[0].mxu0 %v1771
        %v2102 = vpop.f32.mrb[0].mxu0
        %v2103 = vadd.f32 %v1657, %v2102
        %v2104 = vpop.f32.mrb[0].mxu0
        %2105 = vmatprep.mubr.f32.mxu0 0.0
        %2106 = vmatmul.mubr.f32.gmra.mrb[0].mxu0 %v1774
        %v2107 = vpop.f32.mrb[0].mxu0
        %v2108 = vadd.f32 %v1657, %v2107
        %v2109 = vpop.f32.mrb[0].mxu0
        %2110 = vmatprep.mubr.f32.mxu0 0.0
        %2111 = vmatmul.mubr.f32.gmra.mrb[0].mxu0 %v1777
        %v2112 = vpop.f32.mrb[0].mxu0
        %v2113 = vadd.f32 %v1657, %v2112
        %v2114 = vpop.f32.mrb[0].mxu0
        %2115 = vmatprep.mubr.f32.mxu0 0.0
        %2116 = vmatmul.mubr.f32.gmra.mrb[0].mxu0 %v1780
        %v2117 = vpop.f32.mrb[0].mxu0
        %v2118 = vadd.f32 %v1657, %v2117
        %v2119 = vpop.f32.mrb[0].mxu0
        %2120 = vmatprep.mubr.f32.mxu0 0.0
        %2121 = vmatmul.mubr.f32.gmra.mrb[0].mxu0 %v1783
        %v2122 = vpop.f32.mrb[0].mxu0
        %v2123 = vadd.f32 %v1657, %v2122
        %v2124 = vpop.f32.mrb[0].mxu0
        %2125 = vmatprep.mubr.f32.mxu0 0.0
        %2126 = vmatmul.mubr.f32.gmra.mrb[0].mxu0 %v1786
        %v2127 = vpop.f32.mrb[0].mxu0
        %v2128 = vadd.f32 %v1657, %v2127
        %v2129 = vpop.f32.mrb[0].mxu0
        %2130 = vmatprep.mubr.f32.mxu0 0.0
        %2131 = vmatmul.mubr.f32.gmra.mrb[0].mxu0 %v1789
        %v2132 = vpop.f32.mrb[0].mxu0
        %v2133 = vadd.f32 %v1657, %v2132
        %v2134 = vpop.f32.mrb[0].mxu0
        %2135 = vmatprep.mubr.f32.mxu0 0.0
        %2136 = vmatmul.mubr.f32.gmra.mrb[0].mxu0 %v1792
        %v2137 = vpop.f32.mrb[0].mxu0
        %v2138 = vadd.f32 %v1657, %v2137
        %v2139 = vpop.f32.mrb[0].mxu0
        %2140 = vmatprep.mubr.f32.mxu0 0.0
        %2141 = vmatmul.mubr.f32.gmra.mrb[0].mxu0 %v1795
        %v2142 = vpop.f32.mrb[0].mxu0
        %v2143 = vadd.f32 %v1657, %v2142
        %v2144 = vpop.f32.mrb[0].mxu0
        %2145 = vmatprep.mubr.f32.mxu0 0.0
        %2146 = vmatmul.mubr.f32.gmra.mrb[0].mxu0 %v1798
        %v2147 = vpop.f32.mrb[0].mxu0
        %v2148 = vadd.f32 %v1657, %v2147
        %v2149 = vpop.f32.mrb[0].mxu0
        %2150 = vmatprep.mubr.f32.mxu0 0.0
        %2151 = vmatmul.mubr.f32.gmra.mrb[0].mxu0 %v1801
        %v2152 = vpop.f32.mrb[0].mxu0
        %v2153 = vadd.f32 %v1657, %v2152
        %v2154 = vpop.f32.mrb[0].mxu0
        %2155 = vmatprep.mubr.f32.mxu0 0.0
        %2156 = vmatmul.mubr.f32.gmra.mrb[0].mxu0 %v1804
        %v2157 = vpop.f32.mrb[0].mxu0
        %v2158 = vadd.f32 %v1657, %v2157
        %v2159 = vpop.f32.mrb[0].mxu0
        %2160 = vmatprep.mubr.f32.mxu0 0.0
        %2161 = vmatmul.mubr.f32.gmra.mrb[0].mxu0 %v1807
        %v2162 = vpop.f32.mrb[0].mxu0
        %v2163 = vadd.f32 %v1657, %v2162
        %v2164 = vpop.f32.mrb[0].mxu0
        %2165 = vmatprep.mubr.f32.mxu0 0.0
        %2166 = vmatmul.mubr.f32.gmra.mrb[0].mxu0 %v1810
        %v2167 = vpop.f32.mrb[0].mxu0
        %v2168 = vadd.f32 %v1657, %v2167
        %v2169 = vpop.f32.mrb[0].mxu0
        %2170 = vmatprep.mubr.f32.mxu0 0.0
        %2171 = vmatmul.mubr.f32.gmra.mrb[0].mxu0 %v1813
        %v2172 = vpop.f32.mrb[0].mxu0
        %v2173 = vadd.f32 %v1657, %v2172
        %v2174 = vpop.f32.mrb[0].mxu0
        %2175 = vmatprep.mubr.f32.mxu0 0.0
        %2176 = vmatmul.mubr.f32.gmra.mrb[0].mxu0 %v1816
        %v2177 = vpop.f32.mrb[0].mxu0
        %v2178 = vadd.f32 %v1657, %v2177
        %v2179 = vpop.f32.mrb[0].mxu0
        %2180 = vmatprep.mubr.f32.mxu0 0.0
        %2181 = vmatmul.mubr.f32.gmra.mrb[0].mxu0 %v1819
        %v2182 = vpop.f32.mrb[0].mxu0
        %v2183 = vadd.f32 %v1657, %v2182
        %v2184 = vpop.f32.mrb[0].mxu0
        %2185 = vmatprep.mubr.f32.mxu0 0.0
        %2186 = vmatmul.mubr.f32.gmra.mrb[0].mxu0 %v1822
        %v2187 = vpop.f32.mrb[0].mxu0
        %v2188 = vadd.f32 %v1657, %v2187
        %v2189 = vpop.f32.mrb[0].mxu0
        %2190 = vmatprep.mubr.f32.mxu0 0.0
        %2191 = vmatmul.mubr.f32.gmra.mrb[0].mxu0 %v1825
        %v2192 = vpop.f32.mrb[0].mxu0
        %v2193 = vadd.f32 %v1657, %v2192
        %v2194 = vpop.f32.mrb[0].mxu0
        %2195 = vmatprep.mubr.f32.mxu0 0.0
        %2196 = vmatmul.mubr.f32.gmra.mrb[0].mxu0 %v1828
        %v2197 = vpop.f32.mrb[0].mxu0
        %v2198 = vadd.f32 %v1657, %v2197
        %v2199 = vpop.f32.mrb[0].mxu0
        %2200 = vmatprep.mubr.f32.mxu0 0.0
        %2201 = vmatmul.mubr.f32.gmra.mrb[0].mxu0 %v1831
        %v2202 = vpop.f32.mrb[0].mxu0
        %v2203 = vadd.f32 %v1657, %v2202
        %v2204 = vpop.f32.mrb[0].mxu0
        %2205 = vmatprep.mubr.f32.mxu0 0.0
        %2206 = vmatmul.mubr.f32.gmra.mrb[0].mxu0 %v1834
        %v2207 = vpop.f32.mrb[0].mxu0
        %v2208 = vadd.f32 %v1657, %v2207
        %v2209 = vpop.f32.mrb[0].mxu0
        %2210 = vmatprep.mubr.f32.mxu0 0.0
        %2211 = vmatmul.mubr.f32.gmra.mrb[0].mxu0 %v1837
        %v2212 = vpop.f32.mrb[0].mxu0
        %v2213 = vadd.f32 %v1657, %v2212
        %v2214 = vpop.f32.mrb[0].mxu0
        %2215 = vmatprep.mubr.f32.mxu0 0.0
        %2216 = vmatmul.mubr.f32.gmra.mrb[0].mxu0 %v1840
        %v2217 = vpop.f32.mrb[0].mxu0
        %v2218 = vadd.f32 %v1657, %v2217
        %v2219 = vpop.f32.mrb[0].mxu0
        %2220 = vmatprep.mubr.f32.mxu0 0.0
        %2221 = vmatmul.mubr.f32.gmra.mrb[0].mxu0 %v1843
        %v2222 = vpop.f32.mrb[0].mxu0
        %v2223 = vadd.f32 %v1657, %v2222
        %v2224 = vpop.f32.mrb[0].mxu0
        %2225 = vmatprep.mubr.f32.mxu0 0.0
        %2226 = vmatmul.mubr.f32.gmra.mrb[0].mxu0 %v1846
        %v2227 = vpop.f32.mrb[0].mxu0
        %v2228 = vadd.f32 %v1657, %v2227
        %v2229 = vpop.f32.mrb[0].mxu0
        %2230 = vmatprep.mubr.f32.mxu0 0.0
        %2231 = vmatmul.mubr.f32.gmra.mrb[0].mxu0 %v1849
        %v2232 = vpop.f32.mrb[0].mxu0
        %v2233 = vadd.f32 %v1657, %v2232
        %v2234 = vpop.f32.mrb[0].mxu0
        %2235 = vdwg.mxu0
        %2236 = vmax.xlane.f32.xlu0 %v1918
        %v2237 = vpop.xlane.xlu0 %2236
        %2238 = vmax.xlane.f32.xlu0 %v1923
        %v2239 = vpop.xlane.xlu0 %2238
        %2240 = vmax.xlane.f32.xlu0 %v1928
        %v2241 = vpop.xlane.xlu0 %2240
        %2242 = vmax.xlane.f32.xlu0 %v1933
        %v2243 = vpop.xlane.xlu0 %2242
        %2244 = vmax.xlane.f32.xlu0 %v1938
        %v2245 = vpop.xlane.xlu0 %2244
        %2246 = vmax.xlane.f32.xlu0 %v1943
        %v2247 = vpop.xlane.xlu0 %2246
        %2248 = vmax.xlane.f32.xlu0 %v1948
        %v2249 = vpop.xlane.xlu0 %2248
        %2250 = vmax.xlane.f32.xlu0 %v1953
        %v2251 = vpop.xlane.xlu0 %2250
        %2252 = vmax.xlane.f32.xlu0 %v1958
        %v2253 = vpop.xlane.xlu0 %2252
        %2254 = vmax.xlane.f32.xlu0 %v1963
        %v2255 = vpop.xlane.xlu0 %2254
        %2256 = vmax.xlane.f32.xlu0 %v1968
        %v2257 = vpop.xlane.xlu0 %2256
        %2258 = vmax.xlane.f32.xlu0 %v1973
        %v2259 = vpop.xlane.xlu0 %2258
        %2260 = vmax.xlane.f32.xlu0 %v1978
        %v2261 = vpop.xlane.xlu0 %2260
        %2262 = vmax.xlane.f32.xlu0 %v1983
        %v2263 = vpop.xlane.xlu0 %2262
        %2264 = vmax.xlane.f32.xlu0 %v1988
        %v2265 = vpop.xlane.xlu0 %2264
        %2266 = vmax.xlane.f32.xlu0 %v1993
        %v2267 = vpop.xlane.xlu0 %2266
        %2268 = vmax.xlane.f32.xlu0 %v1998
        %v2269 = vpop.xlane.xlu0 %2268
        %2270 = vmax.xlane.f32.xlu0 %v2003
        %v2271 = vpop.xlane.xlu0 %2270
        %2272 = vmax.xlane.f32.xlu0 %v2008
        %v2273 = vpop.xlane.xlu0 %2272
        %2274 = vmax.xlane.f32.xlu0 %v2013
        %v2275 = vpop.xlane.xlu0 %2274
        %2276 = vmax.xlane.f32.xlu0 %v2018
        %v2277 = vpop.xlane.xlu0 %2276
        %2278 = vmax.xlane.f32.xlu0 %v2023
        %v2279 = vpop.xlane.xlu0 %2278
        %2280 = vmax.xlane.f32.xlu0 %v2028
        %v2281 = vpop.xlane.xlu0 %2280
        %2282 = vmax.xlane.f32.xlu0 %v2033
        %v2283 = vpop.xlane.xlu0 %2282
        %2284 = vmax.xlane.f32.xlu0 %v2038
        %v2285 = vpop.xlane.xlu0 %2284
        %2286 = vmax.xlane.f32.xlu0 %v2043
        %v2287 = vpop.xlane.xlu0 %2286
        %2288 = vmax.xlane.f32.xlu0 %v2048
        %v2289 = vpop.xlane.xlu0 %2288
        %2290 = vmax.xlane.f32.xlu0 %v2053
        %v2291 = vpop.xlane.xlu0 %2290
        %2292 = vmax.xlane.f32.xlu0 %v2058
        %v2293 = vpop.xlane.xlu0 %2292
        %2294 = vmax.xlane.f32.xlu0 %v2063
        %v2295 = vpop.xlane.xlu0 %2294
        %2296 = vmax.xlane.f32.xlu0 %v2068
        %v2297 = vpop.xlane.xlu0 %2296
        %2298 = vmax.xlane.f32.xlu0 %v2073
        %v2299 = vpop.xlane.xlu0 %2298
        %2300 = vmax.xlane.f32.xlu0 %v2078
        %v2301 = vpop.xlane.xlu0 %2300
        %2302 = vmax.xlane.f32.xlu0 %v2083
        %v2303 = vpop.xlane.xlu0 %2302
        %2304 = vmax.xlane.f32.xlu0 %v2088
        %v2305 = vpop.xlane.xlu0 %2304
        %2306 = vmax.xlane.f32.xlu0 %v2093
        %v2307 = vpop.xlane.xlu0 %2306
        %2308 = vmax.xlane.f32.xlu0 %v2098
        %v2309 = vpop.xlane.xlu0 %2308
        %2310 = vmax.xlane.f32.xlu0 %v2103
        %v2311 = vpop.xlane.xlu0 %2310
        %2312 = vmax.xlane.f32.xlu0 %v2108
        %v2313 = vpop.xlane.xlu0 %2312
        %2314 = vmax.xlane.f32.xlu0 %v2113
        %v2315 = vpop.xlane.xlu0 %2314
        %2316 = vmax.xlane.f32.xlu0 %v2118
        %v2317 = vpop.xlane.xlu0 %2316
        %2318 = vmax.xlane.f32.xlu0 %v2123
        %v2319 = vpop.xlane.xlu0 %2318
        %2320 = vmax.xlane.f32.xlu0 %v2128
        %v2321 = vpop.xlane.xlu0 %2320
        %2322 = vmax.xlane.f32.xlu0 %v2133
        %v2323 = vpop.xlane.xlu0 %2322
        %2324 = vmax.xlane.f32.xlu0 %v2138
        %v2325 = vpop.xlane.xlu0 %2324
        %2326 = vmax.xlane.f32.xlu0 %v2143
        %v2327 = vpop.xlane.xlu0 %2326
        %2328 = vmax.xlane.f32.xlu0 %v2148
        %v2329 = vpop.xlane.xlu0 %2328
        %2330 = vmax.xlane.f32.xlu0 %v2153
        %v2331 = vpop.xlane.xlu0 %2330
        %2332 = vmax.xlane.f32.xlu0 %v2158
        %v2333 = vpop.xlane.xlu0 %2332
        %2334 = vmax.xlane.f32.xlu0 %v2163
        %v2335 = vpop.xlane.xlu0 %2334
        %2336 = vmax.xlane.f32.xlu0 %v2168
        %v2337 = vpop.xlane.xlu0 %2336
        %2338 = vmax.xlane.f32.xlu0 %v2173
        %v2339 = vpop.xlane.xlu0 %2338
        %2340 = vmax.xlane.f32.xlu0 %v2178
        %v2341 = vpop.xlane.xlu0 %2340
        %2342 = vmax.xlane.f32.xlu0 %v2183
        %v2343 = vpop.xlane.xlu0 %2342
        %2344 = vmax.xlane.f32.xlu0 %v2188
        %v2345 = vpop.xlane.xlu0 %2344
        %2346 = vmax.xlane.f32.xlu0 %v2193
        %v2347 = vpop.xlane.xlu0 %2346
        %2348 = vmax.xlane.f32.xlu0 %v2198
        %v2349 = vpop.xlane.xlu0 %2348
        %2350 = vmax.xlane.f32.xlu0 %v2203
        %v2351 = vpop.xlane.xlu0 %2350
        %2352 = vmax.xlane.f32.xlu0 %v2208
        %v2353 = vpop.xlane.xlu0 %2352
        %2354 = vmax.xlane.f32.xlu0 %v2213
        %v2355 = vpop.xlane.xlu0 %2354
        %2356 = vmax.xlane.f32.xlu0 %v2218
        %v2357 = vpop.xlane.xlu0 %2356
        %2358 = vmax.xlane.f32.xlu0 %v2223
        %v2359 = vpop.xlane.xlu0 %2358
        %2360 = vmax.xlane.f32.xlu0 %v2228
        %v2361 = vpop.xlane.xlu0 %2360
        %2362 = vmax.xlane.f32.xlu0 %v2233
        %v2363 = vpop.xlane.xlu0 %2362
        %v2364 = vsub.f32 %v1918, %v2237
        %v2365 = vsub.f32 %v1923, %v2239
        %v2366 = vsub.f32 %v1928, %v2241
        %v2367 = vsub.f32 %v1933, %v2243
        %v2368 = vsub.f32 %v1938, %v2245
        %v2369 = vsub.f32 %v1943, %v2247
        %v2370 = vsub.f32 %v1948, %v2249
        %v2371 = vsub.f32 %v1953, %v2251
        %v2372 = vsub.f32 %v1958, %v2253
        %v2373 = vsub.f32 %v1963, %v2255
        %v2374 = vsub.f32 %v1968, %v2257
        %v2375 = vsub.f32 %v1973, %v2259
        %v2376 = vsub.f32 %v1978, %v2261
        %v2377 = vsub.f32 %v1983, %v2263
        %v2378 = vsub.f32 %v1988, %v2265
        %v2379 = vsub.f32 %v1993, %v2267
        %v2380 = vsub.f32 %v1998, %v2269
        %v2381 = vsub.f32 %v2003, %v2271
        %v2382 = vsub.f32 %v2008, %v2273
        %v2383 = vsub.f32 %v2013, %v2275
        %v2384 = vsub.f32 %v2018, %v2277
        %v2385 = vsub.f32 %v2023, %v2279
        %v2386 = vsub.f32 %v2028, %v2281
        %v2387 = vsub.f32 %v2033, %v2283
        %v2388 = vsub.f32 %v2038, %v2285
        %v2389 = vsub.f32 %v2043, %v2287
        %v2390 = vsub.f32 %v2048, %v2289
        %v2391 = vsub.f32 %v2053, %v2291
        %v2392 = vsub.f32 %v2058, %v2293
        %v2393 = vsub.f32 %v2063, %v2295
        %v2394 = vsub.f32 %v2068, %v2297
        %v2395 = vsub.f32 %v2073, %v2299
        %v2396 = vsub.f32 %v2078, %v2301
        %v2397 = vsub.f32 %v2083, %v2303
        %v2398 = vsub.f32 %v2088, %v2305
        %v2399 = vsub.f32 %v2093, %v2307
        %v2400 = vsub.f32 %v2098, %v2309
        %v2401 = vsub.f32 %v2103, %v2311
        %v2402 = vsub.f32 %v2108, %v2313
        %v2403 = vsub.f32 %v2113, %v2315
        %v2404 = vsub.f32 %v2118, %v2317
        %v2405 = vsub.f32 %v2123, %v2319
        %v2406 = vsub.f32 %v2128, %v2321
        %v2407 = vsub.f32 %v2133, %v2323
        %v2408 = vsub.f32 %v2138, %v2325
        %v2409 = vsub.f32 %v2143, %v2327
        %v2410 = vsub.f32 %v2148, %v2329
        %v2411 = vsub.f32 %v2153, %v2331
        %v2412 = vsub.f32 %v2158, %v2333
        %v2413 = vsub.f32 %v2163, %v2335
        %v2414 = vsub.f32 %v2168, %v2337
        %v2415 = vsub.f32 %v2173, %v2339
        %v2416 = vsub.f32 %v2178, %v2341
        %v2417 = vsub.f32 %v2183, %v2343
        %v2418 = vsub.f32 %v2188, %v2345
        %v2419 = vsub.f32 %v2193, %v2347
        %v2420 = vsub.f32 %v2198, %v2349
        %v2421 = vsub.f32 %v2203, %v2351
        %v2422 = vsub.f32 %v2208, %v2353
        %v2423 = vsub.f32 %v2213, %v2355
        %v2424 = vsub.f32 %v2218, %v2357
        %v2425 = vsub.f32 %v2223, %v2359
        %v2426 = vsub.f32 %v2228, %v2361
        %v2427 = vsub.f32 %v2233, %v2363
        %v2428 = vmul.f32 %v2364, 1.442695
        %v2429 = vpow.pop %v2428
        %v2430 = vmul.f32 %v2365, 1.442695
        %v2431 = vpow.pop %v2430
        %v2432 = vmul.f32 %v2366, 1.442695
        %v2433 = vpow.pop %v2432
        %v2434 = vmul.f32 %v2367, 1.442695
        %v2435 = vpow.pop %v2434
        %v2436 = vmul.f32 %v2368, 1.442695
        %v2437 = vpow.pop %v2436
        %v2438 = vmul.f32 %v2369, 1.442695
        %v2439 = vpow.pop %v2438
        %v2440 = vmul.f32 %v2370, 1.442695
        %v2441 = vpow.pop %v2440
        %v2442 = vmul.f32 %v2371, 1.442695
        %v2443 = vpow.pop %v2442
        %v2444 = vmul.f32 %v2372, 1.442695
        %v2445 = vpow.pop %v2444
        %v2446 = vmul.f32 %v2373, 1.442695
        %v2447 = vpow.pop %v2446
        %v2448 = vmul.f32 %v2374, 1.442695
        %v2449 = vpow.pop %v2448
        %v2450 = vmul.f32 %v2375, 1.442695
        %v2451 = vpow.pop %v2450
        %v2452 = vmul.f32 %v2376, 1.442695
        %v2453 = vpow.pop %v2452
        %v2454 = vmul.f32 %v2377, 1.442695
        %v2455 = vpow.pop %v2454
        %v2456 = vmul.f32 %v2378, 1.442695
        %v2457 = vpow.pop %v2456
        %v2458 = vmul.f32 %v2379, 1.442695
        %v2459 = vpow.pop %v2458
        %v2460 = vmul.f32 %v2380, 1.442695
        %v2461 = vpow.pop %v2460
        %v2462 = vmul.f32 %v2381, 1.442695
        %v2463 = vpow.pop %v2462
        %v2464 = vmul.f32 %v2382, 1.442695
        %v2465 = vpow.pop %v2464
        %v2466 = vmul.f32 %v2383, 1.442695
        %v2467 = vpow.pop %v2466
        %v2468 = vmul.f32 %v2384, 1.442695
        %v2469 = vpow.pop %v2468
        %v2470 = vmul.f32 %v2385, 1.442695
        %v2471 = vpow.pop %v2470
        %v2472 = vmul.f32 %v2386, 1.442695
        %v2473 = vpow.pop %v2472
        %v2474 = vmul.f32 %v2387, 1.442695
        %v2475 = vpow.pop %v2474
        %v2476 = vmul.f32 %v2388, 1.442695
        %v2477 = vpow.pop %v2476
        %v2478 = vmul.f32 %v2389, 1.442695
        %v2479 = vpow.pop %v2478
        %v2480 = vmul.f32 %v2390, 1.442695
        %v2481 = vpow.pop %v2480
        %v2482 = vmul.f32 %v2391, 1.442695
        %v2483 = vpow.pop %v2482
        %v2484 = vmul.f32 %v2392, 1.442695
        %v2485 = vpow.pop %v2484
        %v2486 = vmul.f32 %v2393, 1.442695
        %v2487 = vpow.pop %v2486
        %v2488 = vmul.f32 %v2394, 1.442695
        %v2489 = vpow.pop %v2488
        %v2490 = vmul.f32 %v2395, 1.442695
        %v2491 = vpow.pop %v2490
        %v2492 = vmul.f32 %v2396, 1.442695
        %v2493 = vpow.pop %v2492
        %v2494 = vmul.f32 %v2397, 1.442695
        %v2495 = vpow.pop %v2494
        %v2496 = vmul.f32 %v2398, 1.442695
        %v2497 = vpow.pop %v2496
        %v2498 = vmul.f32 %v2399, 1.442695
        %v2499 = vpow.pop %v2498
        %v2500 = vmul.f32 %v2400, 1.442695
        %v2501 = vpow.pop %v2500
        %v2502 = vmul.f32 %v2401, 1.442695
        %v2503 = vpow.pop %v2502
        %v2504 = vmul.f32 %v2402, 1.442695
        %v2505 = vpow.pop %v2504
        %v2506 = vmul.f32 %v2403, 1.442695
        %v2507 = vpow.pop %v2506
        %v2508 = vmul.f32 %v2404, 1.442695
        %v2509 = vpow.pop %v2508
        %v2510 = vmul.f32 %v2405, 1.442695
        %v2511 = vpow.pop %v2510
        %v2512 = vmul.f32 %v2406, 1.442695
        %v2513 = vpow.pop %v2512
        %v2514 = vmul.f32 %v2407, 1.442695
        %v2515 = vpow.pop %v2514
        %v2516 = vmul.f32 %v2408, 1.442695
        %v2517 = vpow.pop %v2516
        %v2518 = vmul.f32 %v2409, 1.442695
        %v2519 = vpow.pop %v2518
        %v2520 = vmul.f32 %v2410, 1.442695
        %v2521 = vpow.pop %v2520
        %v2522 = vmul.f32 %v2411, 1.442695
        %v2523 = vpow.pop %v2522
        %v2524 = vmul.f32 %v2412, 1.442695
        %v2525 = vpow.pop %v2524
        %v2526 = vmul.f32 %v2413, 1.442695
        %v2527 = vpow.pop %v2526
        %v2528 = vmul.f32 %v2414, 1.442695
        %v2529 = vpow.pop %v2528
        %v2530 = vmul.f32 %v2415, 1.442695
        %v2531 = vpow.pop %v2530
        %v2532 = vmul.f32 %v2416, 1.442695
        %v2533 = vpow.pop %v2532
        %v2534 = vmul.f32 %v2417, 1.442695
        %v2535 = vpow.pop %v2534
        %v2536 = vmul.f32 %v2418, 1.442695
        %v2537 = vpow.pop %v2536
        %v2538 = vmul.f32 %v2419, 1.442695
        %v2539 = vpow.pop %v2538
        %v2540 = vmul.f32 %v2420, 1.442695
        %v2541 = vpow.pop %v2540
        %v2542 = vmul.f32 %v2421, 1.442695
        %v2543 = vpow.pop %v2542
        %v2544 = vmul.f32 %v2422, 1.442695
        %v2545 = vpow.pop %v2544
        %v2546 = vmul.f32 %v2423, 1.442695
        %v2547 = vpow.pop %v2546
        %v2548 = vmul.f32 %v2424, 1.442695
        %v2549 = vpow.pop %v2548
        %v2550 = vmul.f32 %v2425, 1.442695
        %v2551 = vpow.pop %v2550
        %v2552 = vmul.f32 %v2426, 1.442695
        %v2553 = vpow.pop %v2552
        %v2554 = vmul.f32 %v2427, 1.442695
        %v2555 = vpow.pop %v2554
        %2556 = vadd.xlane.f32.xlu0 %v2429
        %v2557 = vpop.xlane.xlu0 %2556
        %2558 = vadd.xlane.f32.xlu0 %v2431
        %v2559 = vpop.xlane.xlu0 %2558
        %2560 = vadd.xlane.f32.xlu0 %v2433
        %v2561 = vpop.xlane.xlu0 %2560
        %2562 = vadd.xlane.f32.xlu0 %v2435
        %v2563 = vpop.xlane.xlu0 %2562
        %2564 = vadd.xlane.f32.xlu0 %v2437
        %v2565 = vpop.xlane.xlu0 %2564
        %2566 = vadd.xlane.f32.xlu0 %v2439
        %v2567 = vpop.xlane.xlu0 %2566
        %2568 = vadd.xlane.f32.xlu0 %v2441
        %v2569 = vpop.xlane.xlu0 %2568
        %2570 = vadd.xlane.f32.xlu0 %v2443
        %v2571 = vpop.xlane.xlu0 %2570
        %2572 = vadd.xlane.f32.xlu0 %v2445
        %v2573 = vpop.xlane.xlu0 %2572
        %2574 = vadd.xlane.f32.xlu0 %v2447
        %v2575 = vpop.xlane.xlu0 %2574
        %2576 = vadd.xlane.f32.xlu0 %v2449
        %v2577 = vpop.xlane.xlu0 %2576
        %2578 = vadd.xlane.f32.xlu0 %v2451
        %v2579 = vpop.xlane.xlu0 %2578
        %2580 = vadd.xlane.f32.xlu0 %v2453
        %v2581 = vpop.xlane.xlu0 %2580
        %2582 = vadd.xlane.f32.xlu0 %v2455
        %v2583 = vpop.xlane.xlu0 %2582
        %2584 = vadd.xlane.f32.xlu0 %v2457
        %v2585 = vpop.xlane.xlu0 %2584
        %2586 = vadd.xlane.f32.xlu0 %v2459
        %v2587 = vpop.xlane.xlu0 %2586
        %2588 = vadd.xlane.f32.xlu0 %v2461
        %v2589 = vpop.xlane.xlu0 %2588
        %2590 = vadd.xlane.f32.xlu0 %v2463
        %v2591 = vpop.xlane.xlu0 %2590
        %2592 = vadd.xlane.f32.xlu0 %v2465
        %v2593 = vpop.xlane.xlu0 %2592
        %2594 = vadd.xlane.f32.xlu0 %v2467
        %v2595 = vpop.xlane.xlu0 %2594
        %2596 = vadd.xlane.f32.xlu0 %v2469
        %v2597 = vpop.xlane.xlu0 %2596
        %2598 = vadd.xlane.f32.xlu0 %v2471
        %v2599 = vpop.xlane.xlu0 %2598
        %2600 = vadd.xlane.f32.xlu0 %v2473
        %v2601 = vpop.xlane.xlu0 %2600
        %2602 = vadd.xlane.f32.xlu0 %v2475
        %v2603 = vpop.xlane.xlu0 %2602
        %2604 = vadd.xlane.f32.xlu0 %v2477
        %v2605 = vpop.xlane.xlu0 %2604
        %2606 = vadd.xlane.f32.xlu0 %v2479
        %v2607 = vpop.xlane.xlu0 %2606
        %2608 = vadd.xlane.f32.xlu0 %v2481
        %v2609 = vpop.xlane.xlu0 %2608
        %2610 = vadd.xlane.f32.xlu0 %v2483
        %v2611 = vpop.xlane.xlu0 %2610
        %2612 = vadd.xlane.f32.xlu0 %v2485
        %v2613 = vpop.xlane.xlu0 %2612
        %2614 = vadd.xlane.f32.xlu0 %v2487
        %v2615 = vpop.xlane.xlu0 %2614
        %2616 = vadd.xlane.f32.xlu0 %v2489
        %v2617 = vpop.xlane.xlu0 %2616
        %2618 = vadd.xlane.f32.xlu0 %v2491
        %v2619 = vpop.xlane.xlu0 %2618
        %2620 = vadd.xlane.f32.xlu0 %v2493
        %v2621 = vpop.xlane.xlu0 %2620
        %2622 = vadd.xlane.f32.xlu0 %v2495
        %v2623 = vpop.xlane.xlu0 %2622
        %2624 = vadd.xlane.f32.xlu0 %v2497
        %v2625 = vpop.xlane.xlu0 %2624
        %2626 = vadd.xlane.f32.xlu0 %v2499
        %v2627 = vpop.xlane.xlu0 %2626
        %2628 = vadd.xlane.f32.xlu0 %v2501
        %v2629 = vpop.xlane.xlu0 %2628
        %2630 = vadd.xlane.f32.xlu0 %v2503
        %v2631 = vpop.xlane.xlu0 %2630
        %2632 = vadd.xlane.f32.xlu0 %v2505
        %v2633 = vpop.xlane.xlu0 %2632
        %2634 = vadd.xlane.f32.xlu0 %v2507
        %v2635 = vpop.xlane.xlu0 %2634
        %2636 = vadd.xlane.f32.xlu0 %v2509
        %v2637 = vpop.xlane.xlu0 %2636
        %2638 = vadd.xlane.f32.xlu0 %v2511
        %v2639 = vpop.xlane.xlu0 %2638
        %2640 = vadd.xlane.f32.xlu0 %v2513
        %v2641 = vpop.xlane.xlu0 %2640
        %2642 = vadd.xlane.f32.xlu0 %v2515
        %v2643 = vpop.xlane.xlu0 %2642
        %2644 = vadd.xlane.f32.xlu0 %v2517
        %v2645 = vpop.xlane.xlu0 %2644
        %2646 = vadd.xlane.f32.xlu0 %v2519
        %v2647 = vpop.xlane.xlu0 %2646
        %2648 = vadd.xlane.f32.xlu0 %v2521
        %v2649 = vpop.xlane.xlu0 %2648
        %2650 = vadd.xlane.f32.xlu0 %v2523
        %v2651 = vpop.xlane.xlu0 %2650
        %2652 = vadd.xlane.f32.xlu0 %v2525
        %v2653 = vpop.xlane.xlu0 %2652
        %2654 = vadd.xlane.f32.xlu0 %v2527
        %v2655 = vpop.xlane.xlu0 %2654
        %2656 = vadd.xlane.f32.xlu0 %v2529
        %v2657 = vpop.xlane.xlu0 %2656
        %2658 = vadd.xlane.f32.xlu0 %v2531
        %v2659 = vpop.xlane.xlu0 %2658
        %2660 = vadd.xlane.f32.xlu0 %v2533
        %v2661 = vpop.xlane.xlu0 %2660
        %2662 = vadd.xlane.f32.xlu0 %v2535
        %v2663 = vpop.xlane.xlu0 %2662
        %2664 = vadd.xlane.f32.xlu0 %v2537
        %v2665 = vpop.xlane.xlu0 %2664
        %2666 = vadd.xlane.f32.xlu0 %v2539
        %v2667 = vpop.xlane.xlu0 %2666
        %2668 = vadd.xlane.f32.xlu0 %v2541
        %v2669 = vpop.xlane.xlu0 %2668
        %2670 = vadd.xlane.f32.xlu0 %v2543
        %v2671 = vpop.xlane.xlu0 %2670
        %2672 = vadd.xlane.f32.xlu0 %v2545
        %v2673 = vpop.xlane.xlu0 %2672
        %2674 = vadd.xlane.f32.xlu0 %v2547
        %v2675 = vpop.xlane.xlu0 %2674
        %2676 = vadd.xlane.f32.xlu0 %v2549
        %v2677 = vpop.xlane.xlu0 %2676
        %2678 = vadd.xlane.f32.xlu0 %v2551
        %v2679 = vpop.xlane.xlu0 %2678
        %2680 = vadd.xlane.f32.xlu0 %v2553
        %v2681 = vpop.xlane.xlu0 %2680
        %2682 = vadd.xlane.f32.xlu0 %v2555
        %v2683 = vpop.xlane.xlu0 %2682
        %v2684 = vrcp.pop %v2557
        %v2685 = vrcp.pop %v2559
        %v2686 = vrcp.pop %v2561
        %v2687 = vrcp.pop %v2563
        %v2688 = vrcp.pop %v2565
        %v2689 = vrcp.pop %v2567
        %v2690 = vrcp.pop %v2569
        %v2691 = vrcp.pop %v2571
        %v2692 = vrcp.pop %v2573
        %v2693 = vrcp.pop %v2575
        %v2694 = vrcp.pop %v2577
        %v2695 = vrcp.pop %v2579
        %v2696 = vrcp.pop %v2581
        %v2697 = vrcp.pop %v2583
        %v2698 = vrcp.pop %v2585
        %v2699 = vrcp.pop %v2587
        %v2700 = vrcp.pop %v2589
        %v2701 = vrcp.pop %v2591
        %v2702 = vrcp.pop %v2593
        %v2703 = vrcp.pop %v2595
        %v2704 = vrcp.pop %v2597
        %v2705 = vrcp.pop %v2599
        %v2706 = vrcp.pop %v2601
        %v2707 = vrcp.pop %v2603
        %v2708 = vrcp.pop %v2605
        %v2709 = vrcp.pop %v2607
        %v2710 = vrcp.pop %v2609
        %v2711 = vrcp.pop %v2611
        %v2712 = vrcp.pop %v2613
        %v2713 = vrcp.pop %v2615
        %v2714 = vrcp.pop %v2617
        %v2715 = vrcp.pop %v2619
        %v2716 = vrcp.pop %v2621
        %v2717 = vrcp.pop %v2623
        %v2718 = vrcp.pop %v2625
        %v2719 = vrcp.pop %v2627
        %v2720 = vrcp.pop %v2629
        %v2721 = vrcp.pop %v2631
        %v2722 = vrcp.pop %v2633
        %v2723 = vrcp.pop %v2635
        %v2724 = vrcp.pop %v2637
        %v2725 = vrcp.pop %v2639
        %v2726 = vrcp.pop %v2641
        %v2727 = vrcp.pop %v2643
        %v2728 = vrcp.pop %v2645
        %v2729 = vrcp.pop %v2647
        %v2730 = vrcp.pop %v2649
        %v2731 = vrcp.pop %v2651
        %v2732 = vrcp.pop %v2653
        %v2733 = vrcp.pop %v2655
        %v2734 = vrcp.pop %v2657
        %v2735 = vrcp.pop %v2659
        %v2736 = vrcp.pop %v2661
        %v2737 = vrcp.pop %v2663
        %v2738 = vrcp.pop %v2665
        %v2739 = vrcp.pop %v2667
        %v2740 = vrcp.pop %v2669
        %v2741 = vrcp.pop %v2671
        %v2742 = vrcp.pop %v2673
        %v2743 = vrcp.pop %v2675
        %v2744 = vrcp.pop %v2677
        %v2745 = vrcp.pop %v2679
        %v2746 = vrcp.pop %v2681
        %v2747 = vrcp.pop %v2683
        %v2748 = vmul.f32 %v2429, %v2684
        %v2749 = vmul.f32 %v2431, %v2685
        %v2750 = vmul.f32 %v2433, %v2686
        %v2751 = vmul.f32 %v2435, %v2687
        %v2752 = vmul.f32 %v2437, %v2688
        %v2753 = vmul.f32 %v2439, %v2689
        %v2754 = vmul.f32 %v2441, %v2690
        %v2755 = vmul.f32 %v2443, %v2691
        %v2756 = vmul.f32 %v2445, %v2692
        %v2757 = vmul.f32 %v2447, %v2693
        %v2758 = vmul.f32 %v2449, %v2694
        %v2759 = vmul.f32 %v2451, %v2695
        %v2760 = vmul.f32 %v2453, %v2696
        %v2761 = vmul.f32 %v2455, %v2697
        %v2762 = vmul.f32 %v2457, %v2698
        %v2763 = vmul.f32 %v2459, %v2699
        %v2764 = vmul.f32 %v2461, %v2700
        %v2765 = vmul.f32 %v2463, %v2701
        %v2766 = vmul.f32 %v2465, %v2702
        %v2767 = vmul.f32 %v2467, %v2703
        %v2768 = vmul.f32 %v2469, %v2704
        %v2769 = vmul.f32 %v2471, %v2705
        %v2770 = vmul.f32 %v2473, %v2706
        %v2771 = vmul.f32 %v2475, %v2707
        %v2772 = vmul.f32 %v2477, %v2708
        %v2773 = vmul.f32 %v2479, %v2709
        %v2774 = vmul.f32 %v2481, %v2710
        %v2775 = vmul.f32 %v2483, %v2711
        %v2776 = vmul.f32 %v2485, %v2712
        %v2777 = vmul.f32 %v2487, %v2713
        %v2778 = vmul.f32 %v2489, %v2714
        %v2779 = vmul.f32 %v2491, %v2715
        %v2780 = vmul.f32 %v2493, %v2716
        %v2781 = vmul.f32 %v2495, %v2717
        %v2782 = vmul.f32 %v2497, %v2718
        %v2783 = vmul.f32 %v2499, %v2719
        %v2784 = vmul.f32 %v2501, %v2720
        %v2785 = vmul.f32 %v2503, %v2721
        %v2786 = vmul.f32 %v2505, %v2722
        %v2787 = vmul.f32 %v2507, %v2723
        %v2788 = vmul.f32 %v2509, %v2724
        %v2789 = vmul.f32 %v2511, %v2725
        %v2790 = vmul.f32 %v2513, %v2726
        %v2791 = vmul.f32 %v2515, %v2727
        %v2792 = vmul.f32 %v2517, %v2728
        %v2793 = vmul.f32 %v2519, %v2729
        %v2794 = vmul.f32 %v2521, %v2730
        %v2795 = vmul.f32 %v2523, %v2731
        %v2796 = vmul.f32 %v2525, %v2732
        %v2797 = vmul.f32 %v2527, %v2733
        %v2798 = vmul.f32 %v2529, %v2734
        %v2799 = vmul.f32 %v2531, %v2735
        %v2800 = vmul.f32 %v2533, %v2736
        %v2801 = vmul.f32 %v2535, %v2737
        %v2802 = vmul.f32 %v2537, %v2738
        %v2803 = vmul.f32 %v2539, %v2739
        %v2804 = vmul.f32 %v2541, %v2740
        %v2805 = vmul.f32 %v2543, %v2741
        %v2806 = vmul.f32 %v2545, %v2742
        %v2807 = vmul.f32 %v2547, %v2743
        %v2808 = vmul.f32 %v2549, %v2744
        %v2809 = vmul.f32 %v2551, %v2745
        %v2810 = vmul.f32 %v2553, %v2746
        %v2811 = vmul.f32 %v2555, %v2747
        %2812 = vst [vmem:[%s272] sm:$0xff] %v2748
        %2813 = vst [vmem:[%s272 + $0x8] sm:$0xff] %v2749
        %2814 = vst [vmem:[%s272 + $0x10] sm:$0xff] %v2750
        %2815 = vst [vmem:[%s272 + $0x18] sm:$0xff] %v2751
        %2816 = vst [vmem:[%s272 + $0x20] sm:$0xff] %v2752
        %2817 = vst [vmem:[%s272 + $0x28] sm:$0xff] %v2753
        %2818 = vst [vmem:[%s272 + $0x30] sm:$0xff] %v2754
        %2819 = vst [vmem:[%s272 + $0x38] sm:$0xff] %v2755
        %2820 = vst [vmem:[%s272 + $0x40] sm:$0xff] %v2756
        %2821 = vst [vmem:[%s272 + $0x48] sm:$0xff] %v2757
        %2822 = vst [vmem:[%s272 + $0x50] sm:$0xff] %v2758
        %2823 = vst [vmem:[%s272 + $0x58] sm:$0xff] %v2759
        %2824 = vst [vmem:[%s272 + $0x60] sm:$0xff] %v2760
        %2825 = vst [vmem:[%s272 + $0x68] sm:$0xff] %v2761
        %2826 = vst [vmem:[%s272 + $0x70] sm:$0xff] %v2762
        %2827 = vst [vmem:[%s272 + $0x78] sm:$0xff] %v2763
        %2828 = vst [vmem:[%s272 + $0x80] sm:$0xff] %v2764
        %2829 = vst [vmem:[%s272 + $0x88] sm:$0xff] %v2765
        %2830 = vst [vmem:[%s272 + $0x90] sm:$0xff] %v2766
        %2831 = vst [vmem:[%s272 + $0x98] sm:$0xff] %v2767
        %2832 = vst [vmem:[%s272 + $0xa0] sm:$0xff] %v2768
        %2833 = vst [vmem:[%s272 + $0xa8] sm:$0xff] %v2769
        %2834 = vst [vmem:[%s272 + $0xb0] sm:$0xff] %v2770
        %2835 = vst [vmem:[%s272 + $0xb8] sm:$0xff] %v2771
        %2836 = vst [vmem:[%s272 + $0xc0] sm:$0xff] %v2772
        %2837 = vst [vmem:[%s272 + $0xc8] sm:$0xff] %v2773
        %2838 = vst [vmem:[%s272 + $0xd0] sm:$0xff] %v2774
        %2839 = vst [vmem:[%s272 + $0xd8] sm:$0xff] %v2775
        %2840 = vst [vmem:[%s272 + $0xe0] sm:$0xff] %v2776
        %2841 = vst [vmem:[%s272 + $0xe8] sm:$0xff] %v2777
        %2842 = vst [vmem:[%s272 + $0xf0] sm:$0xff] %v2778
        %2843 = vst [vmem:[%s272 + $0xf8] sm:$0xff] %v2779
        %2844 = vst [vmem:[%s272 + $0x100] sm:$0xff] %v2780
        %2845 = vst [vmem:[%s272 + $0x108] sm:$0xff] %v2781
        %2846 = vst [vmem:[%s272 + $0x110] sm:$0xff] %v2782
        %2847 = vst [vmem:[%s272 + $0x118] sm:$0xff] %v2783
        %2848 = vst [vmem:[%s272 + $0x120] sm:$0xff] %v2784
        %2849 = vst [vmem:[%s272 + $0x128] sm:$0xff] %v2785
        %2850 = vst [vmem:[%s272 + $0x130] sm:$0xff] %v2786
        %2851 = vst [vmem:[%s272 + $0x138] sm:$0xff] %v2787
        %2852 = vst [vmem:[%s272 + $0x140] sm:$0xff] %v2788
        %2853 = vst [vmem:[%s272 + $0x148] sm:$0xff] %v2789
        %2854 = vst [vmem:[%s272 + $0x150] sm:$0xff] %v2790
        %2855 = vst [vmem:[%s272 + $0x158] sm:$0xff] %v2791
        %2856 = vst [vmem:[%s272 + $0x160] sm:$0xff] %v2792
        %2857 = vst [vmem:[%s272 + $0x168] sm:$0xff] %v2793
        %2858 = vst [vmem:[%s272 + $0x170] sm:$0xff] %v2794
        %2859 = vst [vmem:[%s272 + $0x178] sm:$0xff] %v2795
        %2860 = vst [vmem:[%s272 + $0x180] sm:$0xff] %v2796
        %2861 = vst [vmem:[%s272 + $0x188] sm:$0xff] %v2797
        %2862 = vst [vmem:[%s272 + $0x190] sm:$0xff] %v2798
        %2863 = vst [vmem:[%s272 + $0x198] sm:$0xff] %v2799
        %2864 = vst [vmem:[%s272 + $0x1a0] sm:$0xff] %v2800
        %2865 = vst [vmem:[%s272 + $0x1a8] sm:$0xff] %v2801
        %2866 = vst [vmem:[%s272 + $0x1b0] sm:$0xff] %v2802
        %2867 = vst [vmem:[%s272 + $0x1b8] sm:$0xff] %v2803
        %2868 = vst [vmem:[%s272 + $0x1c0] sm:$0xff] %v2804
        %2869 = vst [vmem:[%s272 + $0x1c8] sm:$0xff] %v2805
        %2870 = vst [vmem:[%s272 + $0x1d0] sm:$0xff] %v2806
        %2871 = vst [vmem:[%s272 + $0x1d8] sm:$0xff] %v2807
        %2872 = vst [vmem:[%s272 + $0x1e0] sm:$0xff] %v2808
        %2873 = vst [vmem:[%s272 + $0x1e8] sm:$0xff] %v2809
        %2874 = vst [vmem:[%s272 + $0x1f0] sm:$0xff] %v2810
        %2875 = vst [vmem:[%s272 + $0x1f8] sm:$0xff] %v2811
        %s2876 = sand.u32 %s181, 1
        %s2877 = scalar_lea.sflag [#allocation3], %s2876
        %s2878 = sand.u32 %s181, 1
        %s2879 = smul.addr %s2878, 512
        %s2880 = scalar_lea.vmem [#allocation2], %s2879
        // Predicated region
        $region49: #{tpu_custom_call.1} parent=47 // pred_check
          %p2881 = pneg %p191
        $region50: #{tpu_custom_call.1} parent=47 // pred_check_branch
          %2883 = sbr.rel (%p2881) target = $region52
        $region51: #{tpu_custom_call.1} parent=47 // pred_region
          %s2884 = smul.u32 64, %s21
          %s2886 = ssub.s32 8192, 8192
          %2887 = vsyncadd %s2877, %s2886
          %s2888 = smul.addr %s2884, 128
          %s2889 = scalar_lea.hbm %s7, %s2888
          %s2890 = sshll.u32 %s2880, 4
          %s2891 = int_to_ptr.vmem [resolvable:$true] %s2890
          %2896 = dma.vmem_to_hbm [thread:$0]  %s2891, 8192, %s2889, %s2877, 128, 128, 8
        $region52: #{tpu_custom_call.1} parent=47 // pred_fallthru
          _
      $region48: #{tpu_custom_call.1} parent=5 // pred_fallthru
        _
      %p2897 = scmp.le.s32.totalorder 2, %s16
      // Predicated region
      $region53: #{tpu_custom_call.1} parent=5 // pred_check
        %p2898 = pneg %p2897
      $region54: #{tpu_custom_call.1} parent=5 // pred_check_branch
        %2900 = sbr.rel (%p2898) target = $region56
      $region55: #{tpu_custom_call.1} parent=5 // pred_region
        %s2901 = ssub.s32 %s16, 2
        // Predicated region
        $region57: #{tpu_custom_call.1} parent=55 // pred_check
          %p2902 = pneg %p197
        $region58: #{tpu_custom_call.1} parent=55 // pred_check_branch
          %2904 = sbr.rel (%p2902) target = $region60
        $region59: #{tpu_custom_call.1} parent=55 // pred_region
          %s2905 = sand.u32 %s182, 1
          %s2906 = scalar_lea.sflag [#allocation3], %s2905
          %s2907 = sand.u32 %s182, 1
          %s2908 = smul.addr %s2907, 512
          %s2909 = scalar_lea.vmem [#allocation2], %s2908
          %2910 = dma.done %s2906, 8192
        $region60: #{tpu_custom_call.1} parent=55 // pred_fallthru
          _
      $region56: #{tpu_custom_call.1} parent=5 // pred_fallthru
        _
    $region6: #{tpu_custom_call.1} parent=1 // loop_footer
      %s20 = sadd.s32 1, %s16
    $region7: #{tpu_custom_call.1} parent=1 // loop_footer_branch
      %15 = sbr.rel target = $region3
    $region8: #{tpu_custom_call.1} parent=1 // loop_exit
      _
    %2911 = vsyncpa [#allocation3], 1
    %s2912 = scalar_lea.sflag [#allocation3], 1
    %2913 = vsyncpa %s2912, 1

</llo_original>
